<compile_context>
chip_gen: v7x
topology: tpu7x:2x2x1
jax: 0.10.0
libtpu: 0.0.40
codegen_flags: <defaults>
</compile_context>

<pallas_src>
import math

import numpy as np
import jax
import jax.numpy as jnp
from jax import lax
from jax.experimental import pallas as pl
from jax.experimental.pallas import tpu as pltpu

# ---- static model configuration -------------------------------------------
N_NODES = 16
IN_SIZE = 32
OUT_SIZE = 32
EDGE_FEAT = 8
N_AGGS = 4        # mean, max, min, std
N_SCALERS = 3     # identity, amplification, attenuation
DELTA = 1.0
BN_EPS = 1e-5
LEAKY_SLOPE = 0.01
STD_EPS = 1e-30
BIG = 1e30        # finite sentinel for masked max/min (avoids inf * 0 = NaN)


# ---- Pallas kernel ----------------------------------------------------------
def pna_kernel(x_ref, mask_ref, deg_ref, ef_ref,
               wm_ref, bm_ref, wu_ref, bu_ref,
               gamma_ref, beta_ref, wmix_ref, bmix_ref,
               out_ref):
    N, Cin, E = N_NODES, IN_SIZE, EDGE_FEAT
    C4 = N_AGGS * Cin                      # 128 = one lane-full scaler block
    f32 = jnp.float32

    x = x_ref[...]                         # (N, Cin)        node features
    mask = mask_ref[...]                   # (N_src, N_dst, 1) edge-exists mask
    deg = deg_ref[...]                     # (N_dst, 1)      in-degree
    ef = ef_ref[...]                       # (N*N, E)        row u*N+v = edge u->v
    wm = wm_ref[...]                       # (2*Cin+E, Cin)  message MLP M
    bm = bm_ref[...]                       # (1, Cin)

    # --- per-edge messages: M(cat[h_src, h_dst, e]) via broadcasting --------
    s = jnp.dot(x, wm[0:Cin, :], preferred_element_type=f32)          # (N, Cin)
    d = jnp.dot(x, wm[Cin:2 * Cin, :], preferred_element_type=f32)    # (N, Cin)
    em = jnp.dot(ef, wm[2 * Cin:2 * Cin + E, :],
                 preferred_element_type=f32)                          # (N*N, Cin)
    # src-major 3-D messages: msg[u, v, :] = message of edge u -> v
    msg = (s[:, None, :] + d[None, :, :]
           + em.reshape(N, N, Cin) + bm[None, :, :])                  # (N, N, Cin)

    # --- aggregate over sources (axis 0 -> pure element-wise folds) ---------
    msg_m = msg * mask
    acc_sum = jnp.sum(msg_m, axis=0)                                  # (N, Cin)
    acc_sq = jnp.sum(msg_m * msg, axis=0)                             # mask is 0/1
    mmax = jnp.max(jnp.where(mask > 0, msg, -BIG), axis=0)
    mmin = jnp.min(jnp.where(mask > 0, msg, BIG), axis=0)

    inv_d = 1.0 / jnp.maximum(deg, 1.0)
    mean = acc_sum * inv_d
    var = jnp.maximum(acc_sq * inv_d - mean * mean, 0.0)
    std = jnp.sqrt(var + STD_EPS)

    # degree scalers
    log_d = jnp.log(deg + 1.0)
    amp = log_d * (1.0 / DELTA)
    att = DELTA / jnp.where(log_d > 0, log_d, 1.0)

    # aggregators lane-concatenated in DGL order; degree-0 nodes -> h_neigh = 0
    has_nb = deg > 0
    agg = jnp.concatenate([mean, mmax, mmin, std], axis=1)            # (N, 128)
    agg = jnp.where(has_nb, agg, 0.0)

    # --- U(cat[x, agg*ident, agg*amp, agg*att]) : 4 lane-full matmuls -------
    wu = wu_ref[...]                                                  # (Cin+3*C4, Cout)
    h = (jnp.dot(x, wu[0:Cin, :], preferred_element_type=f32)
         + jnp.dot(agg, wu[Cin:Cin + C4, :], preferred_element_type=f32)
         + jnp.dot(agg * amp, wu[Cin + C4:Cin + 2 * C4, :],
                   preferred_element_type=f32)
         + jnp.dot(agg * att, wu[Cin + 2 * C4:Cin + 3 * C4, :],
                   preferred_element_type=f32)
         + bu_ref[...])

    # graph-size normalization: 1/sqrt(N) (single graph)
    h = h * f32(1.0 / math.sqrt(N))

    # BatchNorm1d (training mode: batch statistics, biased variance)
    # TODO(synk): running-mean/var bookkeeping of BatchNorm1d is not modeled
    # (it does not affect the forward output).
    mu = jnp.mean(h, axis=0, keepdims=True)
    var_b = jnp.mean((h - mu) * (h - mu), axis=0, keepdims=True)
    h = (h - mu) * lax.rsqrt(var_b + BN_EPS) * gamma_ref[...] + beta_ref[...]
    # dropout(p=0.0) is the identity.

    # mixing layer: Linear(out,out) + LeakyReLU(0.01)
    h = jnp.dot(h, wmix_ref[...], preferred_element_type=f32) + bmix_ref[...]
    h = jnp.where(h >= 0, h, LEAKY_SLOPE * h)

    # residual connection (in_size == out_size), then ReLU (last == 0)
    out_ref[...] = jnp.maximum(h + x, 0.0)


# ---- wrapper ----------------------------------------------------------------
@jax.jit
def pna_conv_module_forward(n_feat, e_feat, adj, params):
    """n_feat: (N, Cin); e_feat: (N_dst, N_src, E); adj: (N_dst, N_src) in {0,1}."""
    N = n_feat.shape[0]
    E = e_feat.shape[-1]
    f32 = jnp.float32

    adj = adj.astype(f32)
    # Graph prep fused on-device (jit): src-major edge mask, in-degree, and
    # src-major flattened edge features (row u*N+v <-> edge u->v).
    mask = jnp.transpose(adj)[:, :, None]                     # (N_src, N_dst, 1)
    deg = jnp.sum(adj, axis=1, keepdims=True)                 # (N_dst, 1)
    e_sm = jnp.transpose(e_feat.astype(f32), (1, 0, 2)).reshape(N * N, E)

    vmem = pl.BlockSpec(memory_space=pltpu.MemorySpace.VMEM)
    inputs = (n_feat.astype(f32), mask, deg, e_sm,
              params["w_m"], params["b_m"], params["w_u"], params["b_u"],
              params["bn_gamma"], params["bn_beta"],
              params["w_mix"], params["b_mix"])

    return pl.pallas_call(
        pna_kernel,
        out_shape=jax.ShapeDtypeStruct((N, OUT_SIZE), f32),
        in_specs=[vmem] * len(inputs),
        out_specs=vmem,
    )(*inputs)


# ---- deterministic parameter init ------------------------------------------
def init_params(key):
    def linear(k, fan_in, fan_out):
        bound = 1.0 / math.sqrt(fan_in)
        kw, kb = jax.random.split(k)
        w = jax.random.uniform(kw, (fan_in, fan_out), jnp.float32, -bound, bound)
        b = jax.random.uniform(kb, (1, fan_out), jnp.float32, -bound, bound)
        return w, b

    k0, k1, k2 = jax.random.split(key, 3)
    w_m, b_m = linear(k0, 2 * IN_SIZE + EDGE_FEAT, IN_SIZE)
    w_u, b_u = linear(k1, (N_AGGS * N_SCALERS + 1) * IN_SIZE, OUT_SIZE)
    w_mix, b_mix = linear(k2, OUT_SIZE, OUT_SIZE)
    return dict(w_m=w_m, b_m=b_m, w_u=w_u, b_u=b_u, w_mix=w_mix, b_mix=b_mix,
                bn_gamma=jnp.ones((1, OUT_SIZE), jnp.float32),
                bn_beta=jnp.zeros((1, OUT_SIZE), jnp.float32))


# ---- pure-JAX reference (sanity check only) ---------------------------------
def pna_reference(n_feat, e_feat, adj, p):
    N = n_feat.shape[0]
    w_src = p["w_m"][:IN_SIZE]
    w_dst = p["w_m"][IN_SIZE:2 * IN_SIZE]
    w_e = p["w_m"][2 * IN_SIZE:]
    msg = ((n_feat @ w_src)[None, :, :] + (n_feat @ w_dst)[:, None, :]
           + jnp.einsum("vue,ec->vuc", e_feat, w_e) + p["b_m"][None, :, :])
    mask = adj[:, :, None]
    deg = jnp.sum(adj, axis=1, keepdims=True)
    dsafe = jnp.maximum(deg, 1.0)
    mean = jnp.sum(msg * mask, axis=1) / dsafe
    mean_sq = jnp.sum(msg * msg * mask, axis=1) / dsafe
    std = jnp.sqrt(jnp.maximum(mean_sq - mean * mean, 0.0) + STD_EPS)
    mmax = jnp.max(jnp.where(mask > 0, msg, -jnp.inf), axis=1)
    mmin = jnp.min(jnp.where(mask > 0, msg, jnp.inf), axis=1)
    h_agg = jnp.concatenate([mean, mmax, mmin, std], axis=1)
    log_d = jnp.log(deg + 1.0)
    h_neigh = jnp.concatenate(
        [h_agg, h_agg * (log_d / DELTA),
         h_agg * (DELTA / jnp.where(log_d > 0, log_d, 1.0))], axis=1)
    h_neigh = jnp.where(deg > 0, h_neigh, 0.0)
    h = jnp.concatenate([n_feat, h_neigh], axis=1) @ p["w_u"] + p["b_u"]
    h = h * (1.0 / math.sqrt(N))
    mu = jnp.mean(h, axis=0, keepdims=True)
    var_b = jnp.mean((h - mu) ** 2, axis=0, keepdims=True)
    h = (h - mu) / jnp.sqrt(var_b + BN_EPS) * p["bn_gamma"] + p["bn_beta"]
    h = h @ p["w_mix"] + p["b_mix"]
    h = jnp.where(h >= 0, h, LEAKY_SLOPE * h)
    h = h + n_feat
    return jnp.maximum(h, 0.0)


if __name__ == "__main__":
    key = jax.random.PRNGKey(0)
    k1, k2, k3, k4 = jax.random.split(key, 4)

    n_feat = jax.random.normal(k1, (N_NODES, IN_SIZE), jnp.float32)
    e_feat = jax.random.normal(k2, (N_NODES, N_NODES, EDGE_FEAT), jnp.float32)

    # deterministic random directed graph; a ring guarantees in-degree >= 1
    rand_adj = (jax.random.uniform(k3, (N_NODES, N_NODES)) < 0.25).astype(jnp.float32)
    ring = jnp.roll(jnp.eye(N_NODES, dtype=jnp.float32), 1, axis=0)  # edge u -> (u+1)%N
    adj = jnp.clip(rand_adj + ring, 0.0, 1.0) * (1.0 - jnp.eye(N_NODES, dtype=jnp.float32))

    params = init_params(k4)

    out = pna_conv_module_forward(n_feat, e_feat, adj, params)
    jax.block_until_ready(out)

    ref = pna_reference(n_feat, e_feat, adj, params)
    assert out.shape == (N_NODES, OUT_SIZE)
    assert bool(jnp.all(jnp.isfinite(out)))
    assert np.allclose(np.asarray(out), np.asarray(ref), rtol=5e-2, atol=5e-2)

    print("KERNEL_OK")
</pallas_src>

<mosaic_0001>
module attributes {stable_mosaic.version = 11 : i64} {
  func.func @pna_kernel(%arg0: memref<16x32xf32, #tpu.memory_space<vmem>>, %arg1: memref<16x16x1xf32, #tpu.memory_space<vmem>>, %arg2: memref<16x1xf32, #tpu.memory_space<vmem>>, %arg3: memref<256x8xf32, #tpu.memory_space<vmem>>, %arg4: memref<72x32xf32, #tpu.memory_space<vmem>>, %arg5: memref<1x32xf32, #tpu.memory_space<vmem>>, %arg6: memref<416x32xf32, #tpu.memory_space<vmem>>, %arg7: memref<1x32xf32, #tpu.memory_space<vmem>>, %arg8: memref<1x32xf32, #tpu.memory_space<vmem>>, %arg9: memref<1x32xf32, #tpu.memory_space<vmem>>, %arg10: memref<32x32xf32, #tpu.memory_space<vmem>>, %arg11: memref<1x32xf32, #tpu.memory_space<vmem>>, %arg12: memref<16x32xf32, #tpu.memory_space<vmem>>) attributes {dimension_semantics = [], scalar_prefetch = 0 : i64, scratch_operands = 0 : i64, tpu.core_type = #tpu.core_type<tc>} {
    %c0 = arith.constant 0 : index
    %c0_0 = arith.constant 0 : index
    %0 = vector.load %arg0[%c0, %c0_0] : memref<16x32xf32, #tpu.memory_space<vmem>>, vector<16x32xf32>
    %c0_1 = arith.constant 0 : index
    %c0_2 = arith.constant 0 : index
    %c0_3 = arith.constant 0 : index
    %1 = vector.load %arg1[%c0_1, %c0_2, %c0_3] : memref<16x16x1xf32, #tpu.memory_space<vmem>>, vector<16x16x1xf32>
    %c0_4 = arith.constant 0 : index
    %c0_5 = arith.constant 0 : index
    %2 = vector.load %arg2[%c0_4, %c0_5] : memref<16x1xf32, #tpu.memory_space<vmem>>, vector<16x1xf32>
    %c0_6 = arith.constant 0 : index
    %c0_7 = arith.constant 0 : index
    %3 = vector.load %arg3[%c0_6, %c0_7] : memref<256x8xf32, #tpu.memory_space<vmem>>, vector<256x8xf32>
    %c0_8 = arith.constant 0 : index
    %c0_9 = arith.constant 0 : index
    %4 = vector.load %arg4[%c0_8, %c0_9] : memref<72x32xf32, #tpu.memory_space<vmem>>, vector<72x32xf32>
    %c0_10 = arith.constant 0 : index
    %c0_11 = arith.constant 0 : index
    %5 = vector.load %arg5[%c0_10, %c0_11] : memref<1x32xf32, #tpu.memory_space<vmem>>, vector<1x32xf32>
    %6 = vector.extract_strided_slice %4 {offsets = [0, 0], sizes = [32, 32], strides = [1, 1]} : vector<72x32xf32> to vector<32x32xf32>
    %cst = arith.constant dense<0.000000e+00> : vector<16x32xf32>
    %7 = tpu.matmul %0, %6, %cst {dimension_numbers = #tpu.dot_dimension_numbers<[1], [0], [0], [1], [0, 0, 1, 1], [], []>} : vector<16x32xf32>, vector<32x32xf32>, vector<16x32xf32> -> vector<16x32xf32>
    %8 = vector.extract_strided_slice %4 {offsets = [32, 0], sizes = [32, 32], strides = [1, 1]} : vector<72x32xf32> to vector<32x32xf32>
    %cst_12 = arith.constant dense<0.000000e+00> : vector<16x32xf32>
    %9 = tpu.matmul %0, %8, %cst_12 {dimension_numbers = #tpu.dot_dimension_numbers<[1], [0], [0], [1], [0, 0, 1, 1], [], []>} : vector<16x32xf32>, vector<32x32xf32>, vector<16x32xf32> -> vector<16x32xf32>
    %10 = vector.extract_strided_slice %4 {offsets = [64, 0], sizes = [8, 32], strides = [1, 1]} : vector<72x32xf32> to vector<8x32xf32>
    %cst_13 = arith.constant dense<0.000000e+00> : vector<256x32xf32>
    %11 = tpu.matmul %3, %10, %cst_13 {dimension_numbers = #tpu.dot_dimension_numbers<[1], [0], [0], [1], [0, 0, 1, 1], [], []>} : vector<256x8xf32>, vector<8x32xf32>, vector<256x32xf32> -> vector<256x32xf32>
    %12 = vector.shape_cast %7 : vector<16x32xf32> to vector<16x1x32xf32>
    %13 = vector.shape_cast %9 : vector<16x32xf32> to vector<1x16x32xf32>
    %14 = vector.broadcast %12 : vector<16x1x32xf32> to vector<16x16x32xf32>
    %15 = vector.broadcast %13 : vector<1x16x32xf32> to vector<16x16x32xf32>
    %16 = arith.addf %14, %15 : vector<16x16x32xf32>
    %17 = vector.shape_cast %11 : vector<256x32xf32> to vector<16x16x32xf32>
    %18 = arith.addf %16, %17 : vector<16x16x32xf32>
    %19 = vector.shape_cast %5 : vector<1x32xf32> to vector<1x1x32xf32>
    %20 = vector.broadcast %19 : vector<1x1x32xf32> to vector<16x16x32xf32>
    %21 = arith.addf %18, %20 : vector<16x16x32xf32>
    %22 = vector.broadcast %1 : vector<16x16x1xf32> to vector<16x16x32xf32>
    %23 = arith.mulf %21, %22 : vector<16x16x32xf32>
    %cst_14 = arith.constant dense<0.000000e+00> : vector<16x32xf32>
    %24 = vector.multi_reduction <add>, %23, %cst_14 [0] : vector<16x16x32xf32> to vector<16x32xf32>
    %25 = arith.mulf %23, %21 : vector<16x16x32xf32>
    %cst_15 = arith.constant dense<0.000000e+00> : vector<16x32xf32>
    %26 = vector.multi_reduction <add>, %25, %cst_15 [0] : vector<16x16x32xf32> to vector<16x32xf32>
    %cst_16 = arith.constant 0.000000e+00 : f32
    %27 = vector.broadcast %cst_16 : f32 to vector<16x16x1xf32>
    %28 = arith.cmpf ogt, %1, %27 : vector<16x16x1xf32>
    %cst_17 = arith.constant -1.000000e+30 : f32
    %29 = vector.shape_cast %28 : vector<16x16x1xi1> to vector<16x16x1xi1>
    %30 = vector.broadcast %29 : vector<16x16x1xi1> to vector<16x16x32xi1>
    %31 = vector.broadcast %cst_17 : f32 to vector<16x16x32xf32>
    %32 = arith.select %30, %21, %31 : vector<16x16x32xi1>, vector<16x16x32xf32>
    %cst_18 = arith.constant dense<0xFF800000> : vector<16x32xf32>
    %33 = vector.multi_reduction <maximumf>, %32, %cst_18 [0] : vector<16x16x32xf32> to vector<16x32xf32>
    %cst_19 = arith.constant 0.000000e+00 : f32
    %34 = vector.broadcast %cst_19 : f32 to vector<16x16x1xf32>
    %35 = arith.cmpf ogt, %1, %34 : vector<16x16x1xf32>
    %cst_20 = arith.constant 1.000000e+30 : f32
    %36 = vector.shape_cast %35 : vector<16x16x1xi1> to vector<16x16x1xi1>
    %37 = vector.broadcast %36 : vector<16x16x1xi1> to vector<16x16x32xi1>
    %38 = vector.broadcast %cst_20 : f32 to vector<16x16x32xf32>
    %39 = arith.select %37, %21, %38 : vector<16x16x32xi1>, vector<16x16x32xf32>
    %cst_21 = arith.constant dense<0x7F800000> : vector<16x32xf32>
    %40 = vector.multi_reduction <minimumf>, %39, %cst_21 [0] : vector<16x16x32xf32> to vector<16x32xf32>
    %cst_22 = arith.constant 1.000000e+00 : f32
    %41 = vector.broadcast %cst_22 : f32 to vector<16x1xf32>
    %42 = arith.maximumf %2, %41 : vector<16x1xf32>
    %cst_23 = arith.constant 1.000000e+00 : f32
    %43 = vector.broadcast %cst_23 : f32 to vector<16x1xf32>
    %44 = arith.divf %43, %42 : vector<16x1xf32>
    %45 = vector.broadcast %44 : vector<16x1xf32> to vector<16x32xf32>
    %46 = arith.mulf %24, %45 : vector<16x32xf32>
    %47 = vector.broadcast %44 : vector<16x1xf32> to vector<16x32xf32>
    %48 = arith.mulf %26, %47 : vector<16x32xf32>
    %49 = arith.mulf %46, %46 : vector<16x32xf32>
    %50 = arith.subf %48, %49 : vector<16x32xf32>
    %cst_24 = arith.constant 0.000000e+00 : f32
    %51 = vector.broadcast %cst_24 : f32 to vector<16x32xf32>
    %52 = arith.maximumf %50, %51 : vector<16x32xf32>
    %cst_25 = arith.constant 1.000000e-30 : f32
    %53 = vector.broadcast %cst_25 : f32 to vector<16x32xf32>
    %54 = arith.addf %52, %53 : vector<16x32xf32>
    %55 = math.sqrt %54 : vector<16x32xf32>
    %cst_26 = arith.constant 1.000000e+00 : f32
    %56 = vector.broadcast %cst_26 : f32 to vector<16x1xf32>
    %57 = arith.addf %2, %56 : vector<16x1xf32>
    %58 = math.log %57 : vector<16x1xf32>
    %cst_27 = arith.constant 1.000000e+00 : f32
    %59 = vector.broadcast %cst_27 : f32 to vector<16x1xf32>
    %60 = arith.mulf %58, %59 : vector<16x1xf32>
    %cst_28 = arith.constant 0.000000e+00 : f32
    %61 = vector.broadcast %cst_28 : f32 to vector<16x1xf32>
    %62 = arith.cmpf ogt, %58, %61 : vector<16x1xf32>
    %cst_29 = arith.constant 1.000000e+00 : f32
    %63 = vector.broadcast %cst_29 : f32 to vector<16x1xf32>
    %64 = arith.select %62, %58, %63 : vector<16x1xi1>, vector<16x1xf32>
    %cst_30 = arith.constant 1.000000e+00 : f32
    %65 = vector.broadcast %cst_30 : f32 to vector<16x1xf32>
    %66 = arith.divf %65, %64 : vector<16x1xf32>
    %cst_31 = arith.constant 0.000000e+00 : f32
    %67 = vector.broadcast %cst_31 : f32 to vector<16x1xf32>
    %68 = arith.cmpf ogt, %2, %67 : vector<16x1xf32>
    %69 = tpu.concatenate %46, %33, %40, %55 in 1 : vector<16x32xf32>, vector<16x32xf32>, vector<16x32xf32>, vector<16x32xf32> -> vector<16x128xf32>
    %cst_32 = arith.constant 0.000000e+00 : f32
    %70 = vector.shape_cast %68 : vector<16x1xi1> to vector<16x1xi1>
    %71 = vector.broadcast %70 : vector<16x1xi1> to vector<16x128xi1>
    %72 = vector.broadcast %cst_32 : f32 to vector<16x128xf32>
    %73 = arith.select %71, %69, %72 : vector<16x128xi1>, vector<16x128xf32>
    %c0_33 = arith.constant 0 : index
    %c0_34 = arith.constant 0 : index
    %74 = vector.load %arg6[%c0_33, %c0_34] : memref<416x32xf32, #tpu.memory_space<vmem>>, vector<416x32xf32>
    %75 = vector.extract_strided_slice %74 {offsets = [0, 0], sizes = [32, 32], strides = [1, 1]} : vector<416x32xf32> to vector<32x32xf32>
    %cst_35 = arith.constant dense<0.000000e+00> : vector<16x32xf32>
    %76 = tpu.matmul %0, %75, %cst_35 {dimension_numbers = #tpu.dot_dimension_numbers<[1], [0], [0], [1], [0, 0, 1, 1], [], []>} : vector<16x32xf32>, vector<32x32xf32>, vector<16x32xf32> -> vector<16x32xf32>
    %77 = vector.extract_strided_slice %74 {offsets = [32, 0], sizes = [128, 32], strides = [1, 1]} : vector<416x32xf32> to vector<128x32xf32>
    %cst_36 = arith.constant dense<0.000000e+00> : vector<16x32xf32>
    %78 = tpu.matmul %73, %77, %cst_36 {dimension_numbers = #tpu.dot_dimension_numbers<[1], [0], [0], [1], [0, 0, 1, 1], [], []>} : vector<16x128xf32>, vector<128x32xf32>, vector<16x32xf32> -> vector<16x32xf32>
    %79 = arith.addf %76, %78 : vector<16x32xf32>
    %80 = vector.broadcast %60 : vector<16x1xf32> to vector<16x128xf32>
    %81 = arith.mulf %73, %80 : vector<16x128xf32>
    %82 = vector.extract_strided_slice %74 {offsets = [160, 0], sizes = [128, 32], strides = [1, 1]} : vector<416x32xf32> to vector<128x32xf32>
    %cst_37 = arith.constant dense<0.000000e+00> : vector<16x32xf32>
    %83 = tpu.matmul %81, %82, %cst_37 {dimension_numbers = #tpu.dot_dimension_numbers<[1], [0], [0], [1], [0, 0, 1, 1], [], []>} : vector<16x128xf32>, vector<128x32xf32>, vector<16x32xf32> -> vector<16x32xf32>
    %84 = arith.addf %79, %83 : vector<16x32xf32>
    %85 = vector.broadcast %66 : vector<16x1xf32> to vector<16x128xf32>
    %86 = arith.mulf %73, %85 : vector<16x128xf32>
    %87 = vector.extract_strided_slice %74 {offsets = [288, 0], sizes = [128, 32], strides = [1, 1]} : vector<416x32xf32> to vector<128x32xf32>
    %cst_38 = arith.constant dense<0.000000e+00> : vector<16x32xf32>
    %88 = tpu.matmul %86, %87, %cst_38 {dimension_numbers = #tpu.dot_dimension_numbers<[1], [0], [0], [1], [0, 0, 1, 1], [], []>} : vector<16x128xf32>, vector<128x32xf32>, vector<16x32xf32> -> vector<16x32xf32>
    %89 = arith.addf %84, %88 : vector<16x32xf32>
    %c0_39 = arith.constant 0 : index
    %c0_40 = arith.constant 0 : index
    %90 = vector.load %arg7[%c0_39, %c0_40] : memref<1x32xf32, #tpu.memory_space<vmem>>, vector<1x32xf32>
    %91 = vector.broadcast %90 : vector<1x32xf32> to vector<16x32xf32>
    %92 = arith.addf %89, %91 : vector<16x32xf32>
    %cst_41 = arith.constant 2.500000e-01 : f32
    %93 = vector.broadcast %cst_41 : f32 to vector<16x32xf32>
    %94 = arith.mulf %92, %93 : vector<16x32xf32>
    %cst_42 = arith.constant dense<0.000000e+00> : vector<32xf32>
    %95 = vector.multi_reduction <add>, %94, %cst_42 [0] : vector<16x32xf32> to vector<32xf32>
    %96 = vector.shape_cast %95 : vector<32xf32> to vector<1x32xf32>
    %cst_43 = arith.constant 1.600000e+01 : f32
    %97 = vector.broadcast %cst_43 : f32 to vector<1x32xf32>
    %98 = arith.divf %96, %97 : vector<1x32xf32>
    %99 = vector.broadcast %98 : vector<1x32xf32> to vector<16x32xf32>
    %100 = arith.subf %94, %99 : vector<16x32xf32>
    %101 = vector.broadcast %98 : vector<1x32xf32> to vector<16x32xf32>
    %102 = arith.subf %94, %101 : vector<16x32xf32>
    %103 = arith.mulf %100, %102 : vector<16x32xf32>
    %cst_44 = arith.constant dense<0.000000e+00> : vector<32xf32>
    %104 = vector.multi_reduction <add>, %103, %cst_44 [0] : vector<16x32xf32> to vector<32xf32>
    %105 = vector.shape_cast %104 : vector<32xf32> to vector<1x32xf32>
    %cst_45 = arith.constant 1.600000e+01 : f32
    %106 = vector.broadcast %cst_45 : f32 to vector<1x32xf32>
    %107 = arith.divf %105, %106 : vector<1x32xf32>
    %108 = vector.broadcast %98 : vector<1x32xf32> to vector<16x32xf32>
    %109 = arith.subf %94, %108 : vector<16x32xf32>
    %cst_46 = arith.constant 9.99999974E-6 : f32
    %110 = vector.broadcast %cst_46 : f32 to vector<1x32xf32>
    %111 = arith.addf %107, %110 : vector<1x32xf32>
    %112 = math.rsqrt %111 : vector<1x32xf32>
    %113 = vector.broadcast %112 : vector<1x32xf32> to vector<16x32xf32>
    %114 = arith.mulf %109, %113 : vector<16x32xf32>
    %c0_47 = arith.constant 0 : index
    %c0_48 = arith.constant 0 : index
    %115 = vector.load %arg8[%c0_47, %c0_48] : memref<1x32xf32, #tpu.memory_space<vmem>>, vector<1x32xf32>
    %116 = vector.broadcast %115 : vector<1x32xf32> to vector<16x32xf32>
    %117 = arith.mulf %114, %116 : vector<16x32xf32>
    %c0_49 = arith.constant 0 : index
    %c0_50 = arith.constant 0 : index
    %118 = vector.load %arg9[%c0_49, %c0_50] : memref<1x32xf32, #tpu.memory_space<vmem>>, vector<1x32xf32>
    %119 = vector.broadcast %118 : vector<1x32xf32> to vector<16x32xf32>
    %120 = arith.addf %117, %119 : vector<16x32xf32>
    %c0_51 = arith.constant 0 : index
    %c0_52 = arith.constant 0 : index
    %121 = vector.load %arg10[%c0_51, %c0_52] : memref<32x32xf32, #tpu.memory_space<vmem>>, vector<32x32xf32>
    %cst_53 = arith.constant dense<0.000000e+00> : vector<16x32xf32>
    %122 = tpu.matmul %120, %121, %cst_53 {dimension_numbers = #tpu.dot_dimension_numbers<[1], [0], [0], [1], [0, 0, 1, 1], [], []>} : vector<16x32xf32>, vector<32x32xf32>, vector<16x32xf32> -> vector<16x32xf32>
    %c0_54 = arith.constant 0 : index
    %c0_55 = arith.constant 0 : index
    %123 = vector.load %arg11[%c0_54, %c0_55] : memref<1x32xf32, #tpu.memory_space<vmem>>, vector<1x32xf32>
    %124 = vector.broadcast %123 : vector<1x32xf32> to vector<16x32xf32>
    %125 = arith.addf %122, %124 : vector<16x32xf32>
    %cst_56 = arith.constant 0.000000e+00 : f32
    %126 = vector.broadcast %cst_56 : f32 to vector<16x32xf32>
    %127 = arith.cmpf oge, %125, %126 : vector<16x32xf32>
    %cst_57 = arith.constant 0.00999999977 : f32
    %128 = vector.broadcast %cst_57 : f32 to vector<16x32xf32>
    %129 = arith.mulf %128, %125 : vector<16x32xf32>
    %130 = arith.select %127, %125, %129 : vector<16x32xi1>, vector<16x32xf32>
    %131 = arith.addf %130, %0 : vector<16x32xf32>
    %cst_58 = arith.constant 0.000000e+00 : f32
    %132 = vector.broadcast %cst_58 : f32 to vector<16x32xf32>
    %133 = arith.maximumf %131, %132 : vector<16x32xf32>
    %c0_59 = arith.constant 0 : index
    %c0_60 = arith.constant 0 : index
    %134 = vector.load %arg12[%c0_59, %c0_60] : memref<16x32xf32, #tpu.memory_space<vmem>>, vector<16x32xf32>
    tpu.vector_store %arg12[%c0_59, %c0_60], %133 {strides = array<i32>} : memref<16x32xf32, #tpu.memory_space<vmem>>, vector<16x32xf32>,
    return
  }
}

</mosaic_0001>

<llo_original>
// kernel: pna_conv_module_forward.1
$region0: #{pna_conv_module_forward.1}
  #allocation0 [shape = 'u32[]', space=smem, size = 0x4, offset = 0x4, fixed_abs, tag = 'smem constant byte address 0x4 - core index']
  #allocation1 [shape = 'u32[144,128]{1,0:T(1,128)}', space=vmem, size = 0x12000, scoped, tag = 'internal scratch']
  %s0 = inlined_call_operand.vmem [shape: f32[16,32], index: 0, kind: input, shape index: {}]
  %s1 = inlined_call_operand.vmem [shape: f32[16,16,1], index: 1, kind: input, shape index: {}]
  %s2 = inlined_call_operand.vmem [shape: f32[16,1], index: 2, kind: input, shape index: {}]
  %s3 = inlined_call_operand.vmem [shape: f32[256,8], index: 3, kind: input, shape index: {}]
  %s4 = inlined_call_operand.vmem [shape: f32[72,32], index: 4, kind: input, shape index: {}]
  %s5 = inlined_call_operand.vmem [shape: f32[1,32], index: 5, kind: input, shape index: {}]
  %s6 = inlined_call_operand.vmem [shape: f32[416,32], index: 6, kind: input, shape index: {}]
  %s7 = inlined_call_operand.vmem [shape: f32[1,32], index: 7, kind: input, shape index: {}]
  %s8 = inlined_call_operand.vmem [shape: f32[1,32], index: 8, kind: input, shape index: {}]
  %s9 = inlined_call_operand.vmem [shape: f32[1,32], index: 9, kind: input, shape index: {}]
  %s10 = inlined_call_operand.vmem [shape: f32[32,32], index: 10, kind: input, shape index: {}]
  %s11 = inlined_call_operand.vmem [shape: f32[1,32], index: 11, kind: input, shape index: {}]
  %s12 = inlined_call_operand.hbm [shape: f32[16,32], index: 12, kind: output, shape index: {}]
  %s13 = sld [smem:[#allocation0]]
  $region58: #{pna_conv_module_forward.1} parent=0
    _
  %s15 = ssub.s32 1, %s13
  %s16 = scalar_select 0, %s15, %s13
  $region1: #{pna_conv_module_forward.1} parent=0
    #allocation2 [shape = 'u8[8192]{0}', space=vmem, size = 0x2000, scoped, tag = 'output window, operand 0, single buffered']
    #allocation3 [shape = 's32[1]{0}', space=sflag, size = 0x4, scoped, tag = 'scoped memory for pna_conv_module_forward.1']
    %17 = vsyncpa [#allocation3], 0
    // Predicated region
    $region2: #{pna_conv_module_forward.1} parent=1 // pred_check
      _
    $region3: #{pna_conv_module_forward.1} parent=1 // pred_check_branch
      %19 = sbr.rel (0) target = $region5
    $region4: #{pna_conv_module_forward.1} parent=1 // pred_region
      _
    $region5: #{pna_conv_module_forward.1} parent=1 // pred_fallthru
      _
    // Predicated region
    $region6: #{pna_conv_module_forward.1} parent=1 // pred_check
      _
    $region7: #{pna_conv_module_forward.1} parent=1 // pred_check_branch
      %21 = sbr.rel (0) target = $region9
    $region8: #{pna_conv_module_forward.1} parent=1 // pred_region
      _
    $region9: #{pna_conv_module_forward.1} parent=1 // pred_fallthru
      _
    // Predicated region
    $region10: #{pna_conv_module_forward.1} parent=1 // pred_check
      _
    $region11: #{pna_conv_module_forward.1} parent=1 // pred_check_branch
      %23 = sbr.rel (0) target = $region13
    $region12: #{pna_conv_module_forward.1} parent=1 // pred_region
      _
    $region13: #{pna_conv_module_forward.1} parent=1 // pred_fallthru
      _
    // Predicated region
    $region14: #{pna_conv_module_forward.1} parent=1 // pred_check
      _
    $region15: #{pna_conv_module_forward.1} parent=1 // pred_check_branch
      %25 = sbr.rel (0) target = $region17
    $region16: #{pna_conv_module_forward.1} parent=1 // pred_region
      _
    $region17: #{pna_conv_module_forward.1} parent=1 // pred_fallthru
      _
    // Predicated region
    $region18: #{pna_conv_module_forward.1} parent=1 // pred_check
      _
    $region19: #{pna_conv_module_forward.1} parent=1 // pred_check_branch
      %27 = sbr.rel (0) target = $region21
    $region20: #{pna_conv_module_forward.1} parent=1 // pred_region
      _
    $region21: #{pna_conv_module_forward.1} parent=1 // pred_fallthru
      _
    // Predicated region
    $region22: #{pna_conv_module_forward.1} parent=1 // pred_check
      _
    $region23: #{pna_conv_module_forward.1} parent=1 // pred_check_branch
      %29 = sbr.rel (0) target = $region25
    $region24: #{pna_conv_module_forward.1} parent=1 // pred_region
      _
    $region25: #{pna_conv_module_forward.1} parent=1 // pred_fallthru
      _
    // Predicated region
    $region26: #{pna_conv_module_forward.1} parent=1 // pred_check
      _
    $region27: #{pna_conv_module_forward.1} parent=1 // pred_check_branch
      %31 = sbr.rel (0) target = $region29
    $region28: #{pna_conv_module_forward.1} parent=1 // pred_region
      _
    $region29: #{pna_conv_module_forward.1} parent=1 // pred_fallthru
      _
    // Predicated region
    $region30: #{pna_conv_module_forward.1} parent=1 // pred_check
      _
    $region31: #{pna_conv_module_forward.1} parent=1 // pred_check_branch
      %33 = sbr.rel (0) target = $region33
    $region32: #{pna_conv_module_forward.1} parent=1 // pred_region
      _
    $region33: #{pna_conv_module_forward.1} parent=1 // pred_fallthru
      _
    // Predicated region
    $region34: #{pna_conv_module_forward.1} parent=1 // pred_check
      _
    $region35: #{pna_conv_module_forward.1} parent=1 // pred_check_branch
      %35 = sbr.rel (0) target = $region37
    $region36: #{pna_conv_module_forward.1} parent=1 // pred_region
      _
    $region37: #{pna_conv_module_forward.1} parent=1 // pred_fallthru
      _
    // Predicated region
    $region38: #{pna_conv_module_forward.1} parent=1 // pred_check
      _
    $region39: #{pna_conv_module_forward.1} parent=1 // pred_check_branch
      %37 = sbr.rel (0) target = $region41
    $region40: #{pna_conv_module_forward.1} parent=1 // pred_region
      _
    $region41: #{pna_conv_module_forward.1} parent=1 // pred_fallthru
      _
    // Predicated region
    $region42: #{pna_conv_module_forward.1} parent=1 // pred_check
      _
    $region43: #{pna_conv_module_forward.1} parent=1 // pred_check_branch
      %39 = sbr.rel (0) target = $region45
    $region44: #{pna_conv_module_forward.1} parent=1 // pred_region
      _
    $region45: #{pna_conv_module_forward.1} parent=1 // pred_fallthru
      _
    // Predicated region
    $region46: #{pna_conv_module_forward.1} parent=1 // pred_check
      _
    $region47: #{pna_conv_module_forward.1} parent=1 // pred_check_branch
      %41 = sbr.rel (0) target = $region49
    $region48: #{pna_conv_module_forward.1} parent=1 // pred_region
      _
    $region49: #{pna_conv_module_forward.1} parent=1 // pred_fallthru
      _
    %v42 = vld [vmem:[%s0] sm:$0xff]
    %v43 = vld [vmem:[%s0 + $0x8] sm:$0xff]
    %v44 = vld [vmem:[%s1] sm:$0xff]
    %v45 = vld [vmem:[%s1 + $0x8] sm:$0xff]
    %v46 = vld [vmem:[%s1 + $0x10] sm:$0xff]
    %v47 = vld [vmem:[%s1 + $0x18] sm:$0xff]
    %v48 = vld [vmem:[%s1 + $0x20] sm:$0xff]
    %v49 = vld [vmem:[%s1 + $0x28] sm:$0xff]
    %v50 = vld [vmem:[%s1 + $0x30] sm:$0xff]
    %v51 = vld [vmem:[%s1 + $0x38] sm:$0xff]
    %v52 = vld [vmem:[%s1 + $0x40] sm:$0xff]
    %v53 = vld [vmem:[%s1 + $0x48] sm:$0xff]
    %v54 = vld [vmem:[%s1 + $0x50] sm:$0xff]
    %v55 = vld [vmem:[%s1 + $0x58] sm:$0xff]
    %v56 = vld [vmem:[%s1 + $0x60] sm:$0xff]
    %v57 = vld [vmem:[%s1 + $0x68] sm:$0xff]
    %v58 = vld [vmem:[%s1 + $0x70] sm:$0xff]
    %v59 = vld [vmem:[%s1 + $0x78] sm:$0xff]
    %v60 = vld [vmem:[%s1 + $0x80] sm:$0xff]
    %v61 = vld [vmem:[%s1 + $0x88] sm:$0xff]
    %v62 = vld [vmem:[%s1 + $0x90] sm:$0xff]
    %v63 = vld [vmem:[%s1 + $0x98] sm:$0xff]
    %v64 = vld [vmem:[%s1 + $0xa0] sm:$0xff]
    %v65 = vld [vmem:[%s1 + $0xa8] sm:$0xff]
    %v66 = vld [vmem:[%s1 + $0xb0] sm:$0xff]
    %v67 = vld [vmem:[%s1 + $0xb8] sm:$0xff]
    %v68 = vld [vmem:[%s1 + $0xc0] sm:$0xff]
    %v69 = vld [vmem:[%s1 + $0xc8] sm:$0xff]
    %v70 = vld [vmem:[%s1 + $0xd0] sm:$0xff]
    %v71 = vld [vmem:[%s1 + $0xd8] sm:$0xff]
    %v72 = vld [vmem:[%s1 + $0xe0] sm:$0xff]
    %v73 = vld [vmem:[%s1 + $0xe8] sm:$0xff]
    %v74 = vld [vmem:[%s1 + $0xf0] sm:$0xff]
    %v75 = vld [vmem:[%s1 + $0xf8] sm:$0xff]
    %v76 = vld [vmem:[%s2] sm:$0xff]
    %v77 = vld [vmem:[%s2 + $0x8] sm:$0xff]
    %v78 = vld [vmem:[%s3] sm:$0xff]
    %v79 = vld [vmem:[%s3 + $0x8] sm:$0xff]
    %v80 = vld [vmem:[%s3 + $0x10] sm:$0xff]
    %v81 = vld [vmem:[%s3 + $0x18] sm:$0xff]
    %v82 = vld [vmem:[%s3 + $0x20] sm:$0xff]
    %v83 = vld [vmem:[%s3 + $0x28] sm:$0xff]
    %v84 = vld [vmem:[%s3 + $0x30] sm:$0xff]
    %v85 = vld [vmem:[%s3 + $0x38] sm:$0xff]
    %v86 = vld [vmem:[%s3 + $0x40] sm:$0xff]
    %v87 = vld [vmem:[%s3 + $0x48] sm:$0xff]
    %v88 = vld [vmem:[%s3 + $0x50] sm:$0xff]
    %v89 = vld [vmem:[%s3 + $0x58] sm:$0xff]
    %v90 = vld [vmem:[%s3 + $0x60] sm:$0xff]
    %v91 = vld [vmem:[%s3 + $0x68] sm:$0xff]
    %v92 = vld [vmem:[%s3 + $0x70] sm:$0xff]
    %v93 = vld [vmem:[%s3 + $0x78] sm:$0xff]
    %v94 = vld [vmem:[%s3 + $0x80] sm:$0xff]
    %v95 = vld [vmem:[%s3 + $0x88] sm:$0xff]
    %v96 = vld [vmem:[%s3 + $0x90] sm:$0xff]
    %v97 = vld [vmem:[%s3 + $0x98] sm:$0xff]
    %v98 = vld [vmem:[%s3 + $0xa0] sm:$0xff]
    %v99 = vld [vmem:[%s3 + $0xa8] sm:$0xff]
    %v100 = vld [vmem:[%s3 + $0xb0] sm:$0xff]
    %v101 = vld [vmem:[%s3 + $0xb8] sm:$0xff]
    %v102 = vld [vmem:[%s3 + $0xc0] sm:$0xff]
    %v103 = vld [vmem:[%s3 + $0xc8] sm:$0xff]
    %v104 = vld [vmem:[%s3 + $0xd0] sm:$0xff]
    %v105 = vld [vmem:[%s3 + $0xd8] sm:$0xff]
    %v106 = vld [vmem:[%s3 + $0xe0] sm:$0xff]
    %v107 = vld [vmem:[%s3 + $0xe8] sm:$0xff]
    %v108 = vld [vmem:[%s3 + $0xf0] sm:$0xff]
    %v109 = vld [vmem:[%s3 + $0xf8] sm:$0xff]
    %v110 = vld [vmem:[%s4] sm:$0xff]
    %v111 = vld [vmem:[%s4 + $0x8] sm:$0xff]
    %v112 = vld [vmem:[%s4 + $0x10] sm:$0xff]
    %v113 = vld [vmem:[%s4 + $0x18] sm:$0xff]
    %v114 = vld [vmem:[%s4 + $0x20] sm:$0xff]
    %v115 = vld [vmem:[%s4 + $0x28] sm:$0xff]
    %v116 = vld [vmem:[%s4 + $0x30] sm:$0xff]
    %v117 = vld [vmem:[%s4 + $0x38] sm:$0xff]
    %v118 = vld [vmem:[%s4 + $0x40] sm:$0xff]
    %v119 = vld [vmem:[%s5] sm:$0x1]
    %vm120 = vcmask 261120
    %v122 = vsel %vm120, %v42, 0
    %v125 = vsel %vm120, %v43, 0
    %127 = vmatprep.subr.mxu0 0.0
    %128 = vmatpush1.msra.mxu0 %v110
    %129 = vmatprep.subr.mxu0 0.0
    %130 = vmatpush1.msra.mxu0 %v111
    %131 = vmatprep.subr.mxu0 0.0
    %132 = vmatpush1.msra.mxu0 %v112
    %133 = vmatprep.subr.mxu0 0.0
    %134 = vmatpush1.msra.mxu0 %v113
    %135 = vmatprep.subr.mxu0 0.0
    %136 = vmatpush1.msra.mxu0 0.0
    %137 = vmatprep.subr.mxu0 0.0
    %138 = vmatpush1.msra.mxu0 0.0
    %139 = vmatprep.subr.mxu0 0.0
    %140 = vmatpush1.msra.mxu0 0.0
    %141 = vmatprep.subr.mxu0 0.0
    %142 = vmatpush1.msra.mxu0 0.0
    %143 = vmatprep.subr.mxu0 0.0
    %144 = vmatpush1.msra.mxu0 0.0
    %145 = vmatprep.subr.mxu0 0.0
    %146 = vmatpush1.msra.mxu0 0.0
    %147 = vmatprep.subr.mxu0 0.0
    %148 = vmatpush1.msra.mxu0 0.0
    %149 = vmatprep.subr.mxu0 0.0
    %150 = vmatpush1.msra.mxu0 0.0
    %151 = vmatprep.subr.mxu0 0.0
    %152 = vmatpush1.msra.mxu0 0.0
    %153 = vmatprep.subr.mxu0 0.0
    %154 = vmatpush1.msra.mxu0 0.0
    %155 = vmatprep.subr.mxu0 0.0
    %156 = vmatpush1.msra.mxu0 0.0
    %157 = vmatprep.subr.mxu0 0.0
    %158 = vmatpush1.msra.mxu0 0.0
    %159 = vmatprep.subr.mxu0 0.0
    %160 = vmatpush1.msra.mxu0 0.0
    %161 = vmatprep.subr.mxu0 0.0
    %162 = vmatpush1.msra.mxu0 0.0
    %163 = vmatprep.subr.mxu0 0.0
    %164 = vmatpush1.msra.mxu0 0.0
    %165 = vmatprep.subr.mxu0 0.0
    %166 = vmatpush1.msra.mxu0 0.0
    %167 = vmatprep.subr.mxu0 0.0
    %168 = vmatpush1.msra.mxu0 0.0
    %169 = vmatprep.subr.mxu0 0.0
    %170 = vmatpush1.msra.mxu0 0.0
    %171 = vmatprep.subr.mxu0 0.0
    %172 = vmatpush1.msra.mxu0 0.0
    %173 = vmatprep.subr.mxu0 0.0
    %174 = vmatpush1.msra.mxu0 0.0
    %175 = vmatprep.subr.mxu0 0.0
    %176 = vmatpush1.msra.mxu0 0.0
    %177 = vmatprep.subr.mxu0 0.0
    %178 = vmatpush1.msra.mxu0 0.0
    %179 = vmatprep.subr.mxu0 0.0
    %180 = vmatpush1.msra.mxu0 0.0
    %181 = vmatprep.subr.mxu0 0.0
    %182 = vmatpush1.msra.mxu0 0.0
    %183 = vmatprep.subr.mxu0 0.0
    %184 = vmatpush1.msra.mxu0 0.0
    %185 = vmatprep.subr.mxu0 0.0
    %186 = vmatpush1.msra.mxu0 0.0
    %187 = vmatprep.subr.mxu0 0.0
    %188 = vmatpush1.msra.mxu0 0.0
    %189 = vmatprep.subr.mxu0 0.0
    %190 = vmatpush1.msra.mxu0 0.0
    %191 = vmatprep.mubr.f32.mxu0 0.0
    %192 = vmatmul.mubr.f32.gmra.mrb[0].mxu0 %v122
    %v193 = vpop.f32.mrb[0].mxu0
    %v194 = vadd.f32 0.0, %v193
    %v195 = vpop.f32.mrb[0].mxu0
    %196 = vmatprep.mubr.f32.mxu0 0.0
    %197 = vmatmul.mubr.f32.gmra.mrb[0].mxu0 %v125
    %v198 = vpop.f32.mrb[0].mxu0
    %v199 = vadd.f32 0.0, %v198
    %v200 = vpop.f32.mrb[0].mxu0
    %201 = vdwg.mxu0
    %202 = vmatprep.subr.mxu0 0.0
    %203 = vmatpush1.msra.mxu0 %v114
    %204 = vmatprep.subr.mxu0 0.0
    %205 = vmatpush1.msra.mxu0 %v115
    %206 = vmatprep.subr.mxu0 0.0
    %207 = vmatpush1.msra.mxu0 %v116
    %208 = vmatprep.subr.mxu0 0.0
    %209 = vmatpush1.msra.mxu0 %v117
    %210 = vmatprep.subr.mxu0 0.0
    %211 = vmatpush1.msra.mxu0 0.0
    %212 = vmatprep.subr.mxu0 0.0
    %213 = vmatpush1.msra.mxu0 0.0
    %214 = vmatprep.subr.mxu0 0.0
    %215 = vmatpush1.msra.mxu0 0.0
    %216 = vmatprep.subr.mxu0 0.0
    %217 = vmatpush1.msra.mxu0 0.0
    %218 = vmatprep.subr.mxu0 0.0
    %219 = vmatpush1.msra.mxu0 0.0
    %220 = vmatprep.subr.mxu0 0.0
    %221 = vmatpush1.msra.mxu0 0.0
    %222 = vmatprep.subr.mxu0 0.0
    %223 = vmatpush1.msra.mxu0 0.0
    %224 = vmatprep.subr.mxu0 0.0
    %225 = vmatpush1.msra.mxu0 0.0
    %226 = vmatprep.subr.mxu0 0.0
    %227 = vmatpush1.msra.mxu0 0.0
    %228 = vmatprep.subr.mxu0 0.0
    %229 = vmatpush1.msra.mxu0 0.0
    %230 = vmatprep.subr.mxu0 0.0
    %231 = vmatpush1.msra.mxu0 0.0
    %232 = vmatprep.subr.mxu0 0.0
    %233 = vmatpush1.msra.mxu0 0.0
    %234 = vmatprep.subr.mxu0 0.0
    %235 = vmatpush1.msra.mxu0 0.0
    %236 = vmatprep.subr.mxu0 0.0
    %237 = vmatpush1.msra.mxu0 0.0
    %238 = vmatprep.subr.mxu0 0.0
    %239 = vmatpush1.msra.mxu0 0.0
    %240 = vmatprep.subr.mxu0 0.0
    %241 = vmatpush1.msra.mxu0 0.0
    %242 = vmatprep.subr.mxu0 0.0
    %243 = vmatpush1.msra.mxu0 0.0
    %244 = vmatprep.subr.mxu0 0.0
    %245 = vmatpush1.msra.mxu0 0.0
    %246 = vmatprep.subr.mxu0 0.0
    %247 = vmatpush1.msra.mxu0 0.0
    %248 = vmatprep.subr.mxu0 0.0
    %249 = vmatpush1.msra.mxu0 0.0
    %250 = vmatprep.subr.mxu0 0.0
    %251 = vmatpush1.msra.mxu0 0.0
    %252 = vmatprep.subr.mxu0 0.0
    %253 = vmatpush1.msra.mxu0 0.0
    %254 = vmatprep.subr.mxu0 0.0
    %255 = vmatpush1.msra.mxu0 0.0
    %256 = vmatprep.subr.mxu0 0.0
    %257 = vmatpush1.msra.mxu0 0.0
    %258 = vmatprep.subr.mxu0 0.0
    %259 = vmatpush1.msra.mxu0 0.0
    %260 = vmatprep.subr.mxu0 0.0
    %261 = vmatpush1.msra.mxu0 0.0
    %262 = vmatprep.subr.mxu0 0.0
    %263 = vmatpush1.msra.mxu0 0.0
    %264 = vmatprep.subr.mxu0 0.0
    %265 = vmatpush1.msra.mxu0 0.0
    %266 = vmatprep.mubr.f32.mxu0 0.0
    %267 = vmatmul.mubr.f32.gmra.mrb[0].mxu0 %v122
    %v268 = vpop.f32.mrb[0].mxu0
    %v269 = vadd.f32 0.0, %v268
    %v270 = vpop.f32.mrb[0].mxu0
    %271 = vmatprep.mubr.f32.mxu0 0.0
    %272 = vmatmul.mubr.f32.gmra.mrb[0].mxu0 %v125
    %v273 = vpop.f32.mrb[0].mxu0
    %v274 = vadd.f32 0.0, %v273
    %v275 = vpop.f32.mrb[0].mxu0
    %276 = vdwg.mxu0
    %vm277 = vcmask 64512
    %v279 = vsel %vm277, %v78, 0
    %v282 = vsel %vm277, %v79, 0
    %v285 = vsel %vm277, %v80, 0
    %v288 = vsel %vm277, %v81, 0
    %v291 = vsel %vm277, %v82, 0
    %v294 = vsel %vm277, %v83, 0
    %v297 = vsel %vm277, %v84, 0
    %v300 = vsel %vm277, %v85, 0
    %v303 = vsel %vm277, %v86, 0
    %v306 = vsel %vm277, %v87, 0
    %v309 = vsel %vm277, %v88, 0
    %v312 = vsel %vm277, %v89, 0
    %v315 = vsel %vm277, %v90, 0
    %v318 = vsel %vm277, %v91, 0
    %v321 = vsel %vm277, %v92, 0
    %v324 = vsel %vm277, %v93, 0
    %v327 = vsel %vm277, %v94, 0
    %v330 = vsel %vm277, %v95, 0
    %v333 = vsel %vm277, %v96, 0
    %v336 = vsel %vm277, %v97, 0
    %v339 = vsel %vm277, %v98, 0
    %v342 = vsel %vm277, %v99, 0
    %v345 = vsel %vm277, %v100, 0
    %v348 = vsel %vm277, %v101, 0
    %v351 = vsel %vm277, %v102, 0
    %v354 = vsel %vm277, %v103, 0
    %v357 = vsel %vm277, %v104, 0
    %v360 = vsel %vm277, %v105, 0
    %v363 = vsel %vm277, %v106, 0
    %v366 = vsel %vm277, %v107, 0
    %v369 = vsel %vm277, %v108, 0
    %v372 = vsel %vm277, %v109, 0
    %374 = vmatprep.subr.mxu0 0.0
    %375 = vmatpush1.msra.mxu0 %v118
    %376 = vmatprep.subr.mxu0 0.0
    %377 = vmatpush1.msra.mxu0 0.0
    %378 = vmatprep.subr.mxu0 0.0
    %379 = vmatpush1.msra.mxu0 0.0
    %380 = vmatprep.subr.mxu0 0.0
    %381 = vmatpush1.msra.mxu0 0.0
    %382 = vmatprep.subr.mxu0 0.0
    %383 = vmatpush1.msra.mxu0 0.0
    %384 = vmatprep.subr.mxu0 0.0
    %385 = vmatpush1.msra.mxu0 0.0
    %386 = vmatprep.subr.mxu0 0.0
    %387 = vmatpush1.msra.mxu0 0.0
    %388 = vmatprep.subr.mxu0 0.0
    %389 = vmatpush1.msra.mxu0 0.0
    %390 = vmatprep.subr.mxu0 0.0
    %391 = vmatpush1.msra.mxu0 0.0
    %392 = vmatprep.subr.mxu0 0.0
    %393 = vmatpush1.msra.mxu0 0.0
    %394 = vmatprep.subr.mxu0 0.0
    %395 = vmatpush1.msra.mxu0 0.0
    %396 = vmatprep.subr.mxu0 0.0
    %397 = vmatpush1.msra.mxu0 0.0
    %398 = vmatprep.subr.mxu0 0.0
    %399 = vmatpush1.msra.mxu0 0.0
    %400 = vmatprep.subr.mxu0 0.0
    %401 = vmatpush1.msra.mxu0 0.0
    %402 = vmatprep.subr.mxu0 0.0
    %403 = vmatpush1.msra.mxu0 0.0
    %404 = vmatprep.subr.mxu0 0.0
    %405 = vmatpush1.msra.mxu0 0.0
    %406 = vmatprep.subr.mxu0 0.0
    %407 = vmatpush1.msra.mxu0 0.0
    %408 = vmatprep.subr.mxu0 0.0
    %409 = vmatpush1.msra.mxu0 0.0
    %410 = vmatprep.subr.mxu0 0.0
    %411 = vmatpush1.msra.mxu0 0.0
    %412 = vmatprep.subr.mxu0 0.0
    %413 = vmatpush1.msra.mxu0 0.0
    %414 = vmatprep.subr.mxu0 0.0
    %415 = vmatpush1.msra.mxu0 0.0
    %416 = vmatprep.subr.mxu0 0.0
    %417 = vmatpush1.msra.mxu0 0.0
    %418 = vmatprep.subr.mxu0 0.0
    %419 = vmatpush1.msra.mxu0 0.0
    %420 = vmatprep.subr.mxu0 0.0
    %421 = vmatpush1.msra.mxu0 0.0
    %422 = vmatprep.subr.mxu0 0.0
    %423 = vmatpush1.msra.mxu0 0.0
    %424 = vmatprep.subr.mxu0 0.0
    %425 = vmatpush1.msra.mxu0 0.0
    %426 = vmatprep.subr.mxu0 0.0
    %427 = vmatpush1.msra.mxu0 0.0
    %428 = vmatprep.subr.mxu0 0.0
    %429 = vmatpush1.msra.mxu0 0.0
    %430 = vmatprep.subr.mxu0 0.0
    %431 = vmatpush1.msra.mxu0 0.0
    %432 = vmatprep.subr.mxu0 0.0
    %433 = vmatpush1.msra.mxu0 0.0
    %434 = vmatprep.subr.mxu0 0.0
    %435 = vmatpush1.msra.mxu0 0.0
    %436 = vmatprep.subr.mxu0 0.0
    %437 = vmatpush1.msra.mxu0 0.0
    %438 = vmatprep.mubr.f32.mxu0 0.0
    %439 = vmatmul.mubr.f32.gmra.mrb[0].mxu0 %v279
    %v440 = vpop.f32.mrb[0].mxu0
    %v441 = vadd.f32 0.0, %v440
    %v442 = vpop.f32.mrb[0].mxu0
    %443 = vmatprep.mubr.f32.mxu0 0.0
    %444 = vmatmul.mubr.f32.gmra.mrb[0].mxu0 %v282
    %v445 = vpop.f32.mrb[0].mxu0
    %v446 = vadd.f32 0.0, %v445
    %v447 = vpop.f32.mrb[0].mxu0
    %448 = vmatprep.mubr.f32.mxu0 0.0
    %449 = vmatmul.mubr.f32.gmra.mrb[0].mxu0 %v285
    %v450 = vpop.f32.mrb[0].mxu0
    %v451 = vadd.f32 0.0, %v450
    %v452 = vpop.f32.mrb[0].mxu0
    %453 = vmatprep.mubr.f32.mxu0 0.0
    %454 = vmatmul.mubr.f32.gmra.mrb[0].mxu0 %v288
    %v455 = vpop.f32.mrb[0].mxu0
    %v456 = vadd.f32 0.0, %v455
    %v457 = vpop.f32.mrb[0].mxu0
    %458 = vmatprep.mubr.f32.mxu0 0.0
    %459 = vmatmul.mubr.f32.gmra.mrb[0].mxu0 %v291
    %v460 = vpop.f32.mrb[0].mxu0
    %v461 = vadd.f32 0.0, %v460
    %v462 = vpop.f32.mrb[0].mxu0
    %463 = vmatprep.mubr.f32.mxu0 0.0
    %464 = vmatmul.mubr.f32.gmra.mrb[0].mxu0 %v294
    %v465 = vpop.f32.mrb[0].mxu0
    %v466 = vadd.f32 0.0, %v465
    %v467 = vpop.f32.mrb[0].mxu0
    %468 = vmatprep.mubr.f32.mxu0 0.0
    %469 = vmatmul.mubr.f32.gmra.mrb[0].mxu0 %v297
    %v470 = vpop.f32.mrb[0].mxu0
    %v471 = vadd.f32 0.0, %v470
    %v472 = vpop.f32.mrb[0].mxu0
    %473 = vmatprep.mubr.f32.mxu0 0.0
    %474 = vmatmul.mubr.f32.gmra.mrb[0].mxu0 %v300
    %v475 = vpop.f32.mrb[0].mxu0
    %v476 = vadd.f32 0.0, %v475
    %v477 = vpop.f32.mrb[0].mxu0
    %478 = vmatprep.mubr.f32.mxu0 0.0
    %479 = vmatmul.mubr.f32.gmra.mrb[0].mxu0 %v303
    %v480 = vpop.f32.mrb[0].mxu0
    %v481 = vadd.f32 0.0, %v480
    %v482 = vpop.f32.mrb[0].mxu0
    %483 = vmatprep.mubr.f32.mxu0 0.0
    %484 = vmatmul.mubr.f32.gmra.mrb[0].mxu0 %v306
    %v485 = vpop.f32.mrb[0].mxu0
    %v486 = vadd.f32 0.0, %v485
    %v487 = vpop.f32.mrb[0].mxu0
    %488 = vmatprep.mubr.f32.mxu0 0.0
    %489 = vmatmul.mubr.f32.gmra.mrb[0].mxu0 %v309
    %v490 = vpop.f32.mrb[0].mxu0
    %v491 = vadd.f32 0.0, %v490
    %v492 = vpop.f32.mrb[0].mxu0
    %493 = vmatprep.mubr.f32.mxu0 0.0
    %494 = vmatmul.mubr.f32.gmra.mrb[0].mxu0 %v312
    %v495 = vpop.f32.mrb[0].mxu0
    %v496 = vadd.f32 0.0, %v495
    %v497 = vpop.f32.mrb[0].mxu0
    %498 = vmatprep.mubr.f32.mxu0 0.0
    %499 = vmatmul.mubr.f32.gmra.mrb[0].mxu0 %v315
    %v500 = vpop.f32.mrb[0].mxu0
    %v501 = vadd.f32 0.0, %v500
    %v502 = vpop.f32.mrb[0].mxu0
    %503 = vmatprep.mubr.f32.mxu0 0.0
    %504 = vmatmul.mubr.f32.gmra.mrb[0].mxu0 %v318
    %v505 = vpop.f32.mrb[0].mxu0
    %v506 = vadd.f32 0.0, %v505
    %v507 = vpop.f32.mrb[0].mxu0
    %508 = vmatprep.mubr.f32.mxu0 0.0
    %509 = vmatmul.mubr.f32.gmra.mrb[0].mxu0 %v321
    %v510 = vpop.f32.mrb[0].mxu0
    %v511 = vadd.f32 0.0, %v510
    %v512 = vpop.f32.mrb[0].mxu0
    %513 = vmatprep.mubr.f32.mxu0 0.0
    %514 = vmatmul.mubr.f32.gmra.mrb[0].mxu0 %v324
    %v515 = vpop.f32.mrb[0].mxu0
    %v516 = vadd.f32 0.0, %v515
    %v517 = vpop.f32.mrb[0].mxu0
    %518 = vmatprep.mubr.f32.mxu0 0.0
    %519 = vmatmul.mubr.f32.gmra.mrb[0].mxu0 %v327
    %v520 = vpop.f32.mrb[0].mxu0
    %v521 = vadd.f32 0.0, %v520
    %v522 = vpop.f32.mrb[0].mxu0
    %523 = vmatprep.mubr.f32.mxu0 0.0
    %524 = vmatmul.mubr.f32.gmra.mrb[0].mxu0 %v330
    %v525 = vpop.f32.mrb[0].mxu0
    %v526 = vadd.f32 0.0, %v525
    %v527 = vpop.f32.mrb[0].mxu0
    %528 = vmatprep.mubr.f32.mxu0 0.0
    %529 = vmatmul.mubr.f32.gmra.mrb[0].mxu0 %v333
    %v530 = vpop.f32.mrb[0].mxu0
    %v531 = vadd.f32 0.0, %v530
    %v532 = vpop.f32.mrb[0].mxu0
    %533 = vmatprep.mubr.f32.mxu0 0.0
    %534 = vmatmul.mubr.f32.gmra.mrb[0].mxu0 %v336
    %v535 = vpop.f32.mrb[0].mxu0
    %v536 = vadd.f32 0.0, %v535
    %v537 = vpop.f32.mrb[0].mxu0
    %538 = vmatprep.mubr.f32.mxu0 0.0
    %539 = vmatmul.mubr.f32.gmra.mrb[0].mxu0 %v339
    %v540 = vpop.f32.mrb[0].mxu0
    %v541 = vadd.f32 0.0, %v540
    %v542 = vpop.f32.mrb[0].mxu0
    %543 = vmatprep.mubr.f32.mxu0 0.0
    %544 = vmatmul.mubr.f32.gmra.mrb[0].mxu0 %v342
    %v545 = vpop.f32.mrb[0].mxu0
    %v546 = vadd.f32 0.0, %v545
    %v547 = vpop.f32.mrb[0].mxu0
    %548 = vmatprep.mubr.f32.mxu0 0.0
    %549 = vmatmul.mubr.f32.gmra.mrb[0].mxu0 %v345
    %v550 = vpop.f32.mrb[0].mxu0
    %v551 = vadd.f32 0.0, %v550
    %v552 = vpop.f32.mrb[0].mxu0
    %553 = vmatprep.mubr.f32.mxu0 0.0
    %554 = vmatmul.mubr.f32.gmra.mrb[0].mxu0 %v348
    %v555 = vpop.f32.mrb[0].mxu0
    %v556 = vadd.f32 0.0, %v555
    %v557 = vpop.f32.mrb[0].mxu0
    %558 = vmatprep.mubr.f32.mxu0 0.0
    %559 = vmatmul.mubr.f32.gmra.mrb[0].mxu0 %v351
    %v560 = vpop.f32.mrb[0].mxu0
    %v561 = vadd.f32 0.0, %v560
    %v562 = vpop.f32.mrb[0].mxu0
    %563 = vmatprep.mubr.f32.mxu0 0.0
    %564 = vmatmul.mubr.f32.gmra.mrb[0].mxu0 %v354
    %v565 = vpop.f32.mrb[0].mxu0
    %v566 = vadd.f32 0.0, %v565
    %v567 = vpop.f32.mrb[0].mxu0
    %568 = vmatprep.mubr.f32.mxu0 0.0
    %569 = vmatmul.mubr.f32.gmra.mrb[0].mxu0 %v357
    %v570 = vpop.f32.mrb[0].mxu0
    %v571 = vadd.f32 0.0, %v570
    %v572 = vpop.f32.mrb[0].mxu0
    %573 = vmatprep.mubr.f32.mxu0 0.0
    %574 = vmatmul.mubr.f32.gmra.mrb[0].mxu0 %v360
    %v575 = vpop.f32.mrb[0].mxu0
    %v576 = vadd.f32 0.0, %v575
    %v577 = vpop.f32.mrb[0].mxu0
    %578 = vmatprep.mubr.f32.mxu0 0.0
    %579 = vmatmul.mubr.f32.gmra.mrb[0].mxu0 %v363
    %v580 = vpop.f32.mrb[0].mxu0
    %v581 = vadd.f32 0.0, %v580
    %v582 = vpop.f32.mrb[0].mxu0
    %583 = vmatprep.mubr.f32.mxu0 0.0
    %584 = vmatmul.mubr.f32.gmra.mrb[0].mxu0 %v366
    %v585 = vpop.f32.mrb[0].mxu0
    %v586 = vadd.f32 0.0, %v585
    %v587 = vpop.f32.mrb[0].mxu0
    %588 = vmatprep.mubr.f32.mxu0 0.0
    %589 = vmatmul.mubr.f32.gmra.mrb[0].mxu0 %v369
    %v590 = vpop.f32.mrb[0].mxu0
    %v591 = vadd.f32 0.0, %v590
    %v592 = vpop.f32.mrb[0].mxu0
    %593 = vmatprep.mubr.f32.mxu0 0.0
    %594 = vmatmul.mubr.f32.gmra.mrb[0].mxu0 %v372
    %v595 = vpop.f32.mrb[0].mxu0
    %v596 = vadd.f32 0.0, %v595
    %v597 = vpop.f32.mrb[0].mxu0
    %598 = vdwg.mxu0
    %v601 = vcombine.high %v194, %v194
    %v603 = vunpack.c.l.s4 1966171168
    %v604 = vunpack.c.0.s8 %v603
    %v605 = vlaneseq
    %v606 = vshrl.u32 %v605, 7
    %v607 = vsub.s32 %v604, %v606
    %v608 = vrot.slane %v194, %v607
    %v610 = vunpack.c.l.s4 1966171168
    %v611 = vunpack.c.0.s8 %v610
    %v612 = vlaneseq
    %v613 = vshrl.u32 %v612, 7
    %v614 = vsub.s32 %v611, %v613
    %v615 = vrot.slane %v601, %v614
    %v616 = vcombine.high %v608, %v608
    %v617 = vcombine.high %v615, %v615
    %v619 = vunpack.c.l.s4 1966171168
    %v620 = vunpack.c.0.s8 %v619
    %v621 = vlaneseq
    %v622 = vshrl.u32 %v621, 7
    %v623 = vsub.s32 %v620, %v622
    %v624 = vrot.slane %v608, %v623
    %v626 = vunpack.c.l.s4 1966171168
    %v627 = vunpack.c.0.s8 %v626
    %v628 = vlaneseq
    %v629 = vshrl.u32 %v628, 7
    %v630 = vsub.s32 %v627, %v629
    %v631 = vrot.slane %v615, %v630
    %v633 = vunpack.c.l.s4 1966171168
    %v634 = vunpack.c.0.s8 %v633
    %v635 = vlaneseq
    %v636 = vshrl.u32 %v635, 7
    %v637 = vsub.s32 %v634, %v636
    %v638 = vrot.slane %v616, %v637
    %v640 = vunpack.c.l.s4 1966171168
    %v641 = vunpack.c.0.s8 %v640
    %v642 = vlaneseq
    %v643 = vshrl.u32 %v642, 7
    %v644 = vsub.s32 %v641, %v643
    %v645 = vrot.slane %v617, %v644
    %v646 = vcombine.high %v624, %v624
    %v647 = vcombine.high %v631, %v631
    %v648 = vcombine.high %v638, %v638
    %v649 = vcombine.high %v645, %v645
    %v650 = vcombine.high %v199, %v199
    %v652 = vunpack.c.l.s4 1966171168
    %v653 = vunpack.c.0.s8 %v652
    %v654 = vlaneseq
    %v655 = vshrl.u32 %v654, 7
    %v656 = vsub.s32 %v653, %v655
    %v657 = vrot.slane %v199, %v656
    %v659 = vunpack.c.l.s4 1966171168
    %v660 = vunpack.c.0.s8 %v659
    %v661 = vlaneseq
    %v662 = vshrl.u32 %v661, 7
    %v663 = vsub.s32 %v660, %v662
    %v664 = vrot.slane %v650, %v663
    %v665 = vcombine.high %v657, %v657
    %v666 = vcombine.high %v664, %v664
    %v668 = vunpack.c.l.s4 1966171168
    %v669 = vunpack.c.0.s8 %v668
    %v670 = vlaneseq
    %v671 = vshrl.u32 %v670, 7
    %v672 = vsub.s32 %v669, %v671
    %v673 = vrot.slane %v657, %v672
    %v675 = vunpack.c.l.s4 1966171168
    %v676 = vunpack.c.0.s8 %v675
    %v677 = vlaneseq
    %v678 = vshrl.u32 %v677, 7
    %v679 = vsub.s32 %v676, %v678
    %v680 = vrot.slane %v664, %v679
    %v682 = vunpack.c.l.s4 1966171168
    %v683 = vunpack.c.0.s8 %v682
    %v684 = vlaneseq
    %v685 = vshrl.u32 %v684, 7
    %v686 = vsub.s32 %v683, %v685
    %v687 = vrot.slane %v665, %v686
    %v689 = vunpack.c.l.s4 1966171168
    %v690 = vunpack.c.0.s8 %v689
    %v691 = vlaneseq
    %v692 = vshrl.u32 %v691, 7
    %v693 = vsub.s32 %v690, %v692
    %v694 = vrot.slane %v666, %v693
    %v695 = vcombine.high %v673, %v673
    %v696 = vcombine.high %v680, %v680
    %v697 = vcombine.high %v687, %v687
    %v698 = vcombine.high %v694, %v694
    %v699 = vlaneseq
    %v700 = vshrl.u32 %v699, 7
    %v701 = vsub.s32 0, %v700
    %v702 = vrot.slane %v624, %v701
    %v703 = vlaneseq
    %v704 = vshrl.u32 %v703, 7
    %v705 = vsub.s32 0, %v704
    %v706 = vrot.slane %v638, %v705
    %v707 = vlaneseq
    %v708 = vshrl.u32 %v707, 7
    %v709 = vsub.s32 0, %v708
    %v710 = vrot.slane %v646, %v709
    %v711 = vlaneseq
    %v712 = vshrl.u32 %v711, 7
    %v713 = vsub.s32 0, %v712
    %v714 = vrot.slane %v648, %v713
    %v715 = vlaneseq
    %v716 = vshrl.u32 %v715, 7
    %v717 = vsub.s32 0, %v716
    %v718 = vrot.slane %v631, %v717
    %v719 = vlaneseq
    %v720 = vshrl.u32 %v719, 7
    %v721 = vsub.s32 0, %v720
    %v722 = vrot.slane %v645, %v721
    %v723 = vlaneseq
    %v724 = vshrl.u32 %v723, 7
    %v725 = vsub.s32 0, %v724
    %v726 = vrot.slane %v647, %v725
    %v727 = vlaneseq
    %v728 = vshrl.u32 %v727, 7
    %v729 = vsub.s32 0, %v728
    %v730 = vrot.slane %v649, %v729
    %v731 = vlaneseq
    %v732 = vshrl.u32 %v731, 7
    %v733 = vsub.s32 0, %v732
    %v734 = vrot.slane %v673, %v733
    %v735 = vlaneseq
    %v736 = vshrl.u32 %v735, 7
    %v737 = vsub.s32 0, %v736
    %v738 = vrot.slane %v687, %v737
    %v739 = vlaneseq
    %v740 = vshrl.u32 %v739, 7
    %v741 = vsub.s32 0, %v740
    %v742 = vrot.slane %v695, %v741
    %v743 = vlaneseq
    %v744 = vshrl.u32 %v743, 7
    %v745 = vsub.s32 0, %v744
    %v746 = vrot.slane %v697, %v745
    %v747 = vlaneseq
    %v748 = vshrl.u32 %v747, 7
    %v749 = vsub.s32 0, %v748
    %v750 = vrot.slane %v680, %v749
    %v751 = vlaneseq
    %v752 = vshrl.u32 %v751, 7
    %v753 = vsub.s32 0, %v752
    %v754 = vrot.slane %v694, %v753
    %v755 = vlaneseq
    %v756 = vshrl.u32 %v755, 7
    %v757 = vsub.s32 0, %v756
    %v758 = vrot.slane %v696, %v757
    %v759 = vlaneseq
    %v760 = vshrl.u32 %v759, 7
    %v761 = vsub.s32 0, %v760
    %v762 = vrot.slane %v698, %v761
    %v779 = vadd.f32 %v702, %v269
    %v780 = vadd.f32 %v702, %v274
    %v781 = vadd.f32 %v706, %v269
    %v782 = vadd.f32 %v706, %v274
    %v783 = vadd.f32 %v710, %v269
    %v784 = vadd.f32 %v710, %v274
    %v785 = vadd.f32 %v714, %v269
    %v786 = vadd.f32 %v714, %v274
    %v787 = vadd.f32 %v718, %v269
    %v788 = vadd.f32 %v718, %v274
    %v789 = vadd.f32 %v722, %v269
    %v790 = vadd.f32 %v722, %v274
    %v791 = vadd.f32 %v726, %v269
    %v792 = vadd.f32 %v726, %v274
    %v793 = vadd.f32 %v730, %v269
    %v794 = vadd.f32 %v730, %v274
    %v795 = vadd.f32 %v734, %v269
    %v796 = vadd.f32 %v734, %v274
    %v797 = vadd.f32 %v738, %v269
    %v798 = vadd.f32 %v738, %v274
    %v799 = vadd.f32 %v742, %v269
    %v800 = vadd.f32 %v742, %v274
    %v801 = vadd.f32 %v746, %v269
    %v802 = vadd.f32 %v746, %v274
    %v803 = vadd.f32 %v750, %v269
    %v804 = vadd.f32 %v750, %v274
    %v805 = vadd.f32 %v754, %v269
    %v806 = vadd.f32 %v754, %v274
    %v807 = vadd.f32 %v758, %v269
    %v808 = vadd.f32 %v758, %v274
    %v809 = vadd.f32 %v762, %v269
    %v810 = vadd.f32 %v762, %v274
    %v811 = vadd.f32 %v779, %v441
    %v812 = vadd.f32 %v780, %v446
    %v813 = vadd.f32 %v781, %v451
    %v814 = vadd.f32 %v782, %v456
    %v815 = vadd.f32 %v783, %v461
    %v816 = vadd.f32 %v784, %v466
    %v817 = vadd.f32 %v785, %v471
    %v818 = vadd.f32 %v786, %v476
    %v819 = vadd.f32 %v787, %v481
    %v820 = vadd.f32 %v788, %v486
    %v821 = vadd.f32 %v789, %v491
    %v822 = vadd.f32 %v790, %v496
    %v823 = vadd.f32 %v791, %v501
    %v824 = vadd.f32 %v792, %v506
    %v825 = vadd.f32 %v793, %v511
    %v826 = vadd.f32 %v794, %v516
    %v827 = vadd.f32 %v795, %v521
    %v828 = vadd.f32 %v796, %v526
    %v829 = vadd.f32 %v797, %v531
    %v830 = vadd.f32 %v798, %v536
    %v831 = vadd.f32 %v799, %v541
    %v832 = vadd.f32 %v800, %v546
    %v833 = vadd.f32 %v801, %v551
    %v834 = vadd.f32 %v802, %v556
    %v835 = vadd.f32 %v803, %v561
    %v836 = vadd.f32 %v804, %v566
    %v837 = vadd.f32 %v805, %v571
    %v838 = vadd.f32 %v806, %v576
    %v839 = vadd.f32 %v807, %v581
    %v840 = vadd.f32 %v808, %v586
    %v841 = vadd.f32 %v809, %v591
    %v842 = vadd.f32 %v810, %v596
    %v844 = vlaneseq
    %v845 = vshrl.u32 %v844, 7
    %v846 = vsub.s32 0, %v845
    %v847 = vrot.slane %v119, %v846
    %v849 = vadd.f32 %v811, %v847
    %v850 = vadd.f32 %v812, %v847
    %v851 = vadd.f32 %v813, %v847
    %v852 = vadd.f32 %v814, %v847
    %v853 = vadd.f32 %v815, %v847
    %v854 = vadd.f32 %v816, %v847
    %v855 = vadd.f32 %v817, %v847
    %v856 = vadd.f32 %v818, %v847
    %v857 = vadd.f32 %v819, %v847
    %v858 = vadd.f32 %v820, %v847
    %v859 = vadd.f32 %v821, %v847
    %v860 = vadd.f32 %v822, %v847
    %v861 = vadd.f32 %v823, %v847
    %v862 = vadd.f32 %v824, %v847
    %v863 = vadd.f32 %v825, %v847
    %v864 = vadd.f32 %v826, %v847
    %v865 = vadd.f32 %v827, %v847
    %v866 = vadd.f32 %v828, %v847
    %v867 = vadd.f32 %v829, %v847
    %v868 = vadd.f32 %v830, %v847
    %v869 = vadd.f32 %v831, %v847
    %v870 = vadd.f32 %v832, %v847
    %v871 = vadd.f32 %v833, %v847
    %v872 = vadd.f32 %v834, %v847
    %v873 = vadd.f32 %v835, %v847
    %v874 = vadd.f32 %v836, %v847
    %v875 = vadd.f32 %v837, %v847
    %v876 = vadd.f32 %v838, %v847
    %v877 = vadd.f32 %v839, %v847
    %v878 = vadd.f32 %v840, %v847
    %v879 = vadd.f32 %v841, %v847
    %v880 = vadd.f32 %v842, %v847
    %882 = vset.pattern.permute.xlu0 0
    %883 = vperm.xlu0 %882, %v44
    %v884 = vpop.permute.xlu0 %883
    %887 = vset.pattern.permute.xlu0 0
    %888 = vperm.xlu0 %887, %v45
    %v889 = vpop.permute.xlu0 %888
    %892 = vset.pattern.permute.xlu0 0
    %893 = vperm.xlu0 %892, %v46
    %v894 = vpop.permute.xlu0 %893
    %897 = vset.pattern.permute.xlu0 0
    %898 = vperm.xlu0 %897, %v47
    %v899 = vpop.permute.xlu0 %898
    %902 = vset.pattern.permute.xlu0 0
    %903 = vperm.xlu0 %902, %v48
    %v904 = vpop.permute.xlu0 %903
    %907 = vset.pattern.permute.xlu0 0
    %908 = vperm.xlu0 %907, %v49
    %v909 = vpop.permute.xlu0 %908
    %912 = vset.pattern.permute.xlu0 0
    %913 = vperm.xlu0 %912, %v50
    %v914 = vpop.permute.xlu0 %913
    %917 = vset.pattern.permute.xlu0 0
    %918 = vperm.xlu0 %917, %v51
    %v919 = vpop.permute.xlu0 %918
    %922 = vset.pattern.permute.xlu0 0
    %923 = vperm.xlu0 %922, %v52
    %v924 = vpop.permute.xlu0 %923
    %927 = vset.pattern.permute.xlu0 0
    %928 = vperm.xlu0 %927, %v53
    %v929 = vpop.permute.xlu0 %928
    %932 = vset.pattern.permute.xlu0 0
    %933 = vperm.xlu0 %932, %v54
    %v934 = vpop.permute.xlu0 %933
    %937 = vset.pattern.permute.xlu0 0
    %938 = vperm.xlu0 %937, %v55
    %v939 = vpop.permute.xlu0 %938
    %942 = vset.pattern.permute.xlu0 0
    %943 = vperm.xlu0 %942, %v56
    %v944 = vpop.permute.xlu0 %943
    %947 = vset.pattern.permute.xlu0 0
    %948 = vperm.xlu0 %947, %v57
    %v949 = vpop.permute.xlu0 %948
    %952 = vset.pattern.permute.xlu0 0
    %953 = vperm.xlu0 %952, %v58
    %v954 = vpop.permute.xlu0 %953
    %957 = vset.pattern.permute.xlu0 0
    %958 = vperm.xlu0 %957, %v59
    %v959 = vpop.permute.xlu0 %958
    %962 = vset.pattern.permute.xlu0 0
    %963 = vperm.xlu0 %962, %v60
    %v964 = vpop.permute.xlu0 %963
    %967 = vset.pattern.permute.xlu0 0
    %968 = vperm.xlu0 %967, %v61
    %v969 = vpop.permute.xlu0 %968
    %972 = vset.pattern.permute.xlu0 0
    %973 = vperm.xlu0 %972, %v62
    %v974 = vpop.permute.xlu0 %973
    %977 = vset.pattern.permute.xlu0 0
    %978 = vperm.xlu0 %977, %v63
    %v979 = vpop.permute.xlu0 %978
    %982 = vset.pattern.permute.xlu0 0
    %983 = vperm.xlu0 %982, %v64
    %v984 = vpop.permute.xlu0 %983
    %987 = vset.pattern.permute.xlu0 0
    %988 = vperm.xlu0 %987, %v65
    %v989 = vpop.permute.xlu0 %988
    %992 = vset.pattern.permute.xlu0 0
    %993 = vperm.xlu0 %992, %v66
    %v994 = vpop.permute.xlu0 %993
    %997 = vset.pattern.permute.xlu0 0
    %998 = vperm.xlu0 %997, %v67
    %v999 = vpop.permute.xlu0 %998
    %1002 = vset.pattern.permute.xlu0 0
    %1003 = vperm.xlu0 %1002, %v68
    %v1004 = vpop.permute.xlu0 %1003
    %1007 = vset.pattern.permute.xlu0 0
    %1008 = vperm.xlu0 %1007, %v69
    %v1009 = vpop.permute.xlu0 %1008
    %1012 = vset.pattern.permute.xlu0 0
    %1013 = vperm.xlu0 %1012, %v70
    %v1014 = vpop.permute.xlu0 %1013
    %1017 = vset.pattern.permute.xlu0 0
    %1018 = vperm.xlu0 %1017, %v71
    %v1019 = vpop.permute.xlu0 %1018
    %1022 = vset.pattern.permute.xlu0 0
    %1023 = vperm.xlu0 %1022, %v72
    %v1024 = vpop.permute.xlu0 %1023
    %1027 = vset.pattern.permute.xlu0 0
    %1028 = vperm.xlu0 %1027, %v73
    %v1029 = vpop.permute.xlu0 %1028
    %1032 = vset.pattern.permute.xlu0 0
    %1033 = vperm.xlu0 %1032, %v74
    %v1034 = vpop.permute.xlu0 %1033
    %1037 = vset.pattern.permute.xlu0 0
    %1038 = vperm.xlu0 %1037, %v75
    %v1039 = vpop.permute.xlu0 %1038
    %v1041 = vmul.f32 %v849, %v884
    %v1042 = vmul.f32 %v850, %v889
    %v1043 = vmul.f32 %v851, %v894
    %v1044 = vmul.f32 %v852, %v899
    %v1045 = vmul.f32 %v853, %v904
    %v1046 = vmul.f32 %v854, %v909
    %v1047 = vmul.f32 %v855, %v914
    %v1048 = vmul.f32 %v856, %v919
    %v1049 = vmul.f32 %v857, %v924
    %v1050 = vmul.f32 %v858, %v929
    %v1051 = vmul.f32 %v859, %v934
    %v1052 = vmul.f32 %v860, %v939
    %v1053 = vmul.f32 %v861, %v944
    %v1054 = vmul.f32 %v862, %v949
    %v1055 = vmul.f32 %v863, %v954
    %v1056 = vmul.f32 %v864, %v959
    %v1057 = vmul.f32 %v865, %v964
    %v1058 = vmul.f32 %v866, %v969
    %v1059 = vmul.f32 %v867, %v974
    %v1060 = vmul.f32 %v868, %v979
    %v1061 = vmul.f32 %v869, %v984
    %v1062 = vmul.f32 %v870, %v989
    %v1063 = vmul.f32 %v871, %v994
    %v1064 = vmul.f32 %v872, %v999
    %v1065 = vmul.f32 %v873, %v1004
    %v1066 = vmul.f32 %v874, %v1009
    %v1067 = vmul.f32 %v875, %v1014
    %v1068 = vmul.f32 %v876, %v1019
    %v1069 = vmul.f32 %v877, %v1024
    %v1070 = vmul.f32 %v878, %v1029
    %v1071 = vmul.f32 %v879, %v1034
    %v1072 = vmul.f32 %v880, %v1039
    %v1073 = vsel %vm120, %v1041, 0.0
    %v1074 = vsel %vm120, %v1043, 0.0
    %v1075 = vadd.f32 %v1073, %v1074
    %v1076 = vsel %vm120, %v1045, 0.0
    %v1077 = vadd.f32 %v1075, %v1076
    %v1078 = vsel %vm120, %v1047, 0.0
    %v1079 = vadd.f32 %v1077, %v1078
    %v1080 = vsel %vm120, %v1049, 0.0
    %v1081 = vadd.f32 %v1079, %v1080
    %v1082 = vsel %vm120, %v1051, 0.0
    %v1083 = vadd.f32 %v1081, %v1082
    %v1084 = vsel %vm120, %v1053, 0.0
    %v1085 = vadd.f32 %v1083, %v1084
    %v1086 = vsel %vm120, %v1055, 0.0
    %v1087 = vadd.f32 %v1085, %v1086
    %v1088 = vsel %vm120, %v1057, 0.0
    %v1089 = vadd.f32 %v1087, %v1088
    %v1090 = vsel %vm120, %v1059, 0.0
    %v1091 = vadd.f32 %v1089, %v1090
    %v1092 = vsel %vm120, %v1061, 0.0
    %v1093 = vadd.f32 %v1091, %v1092
    %v1094 = vsel %vm120, %v1063, 0.0
    %v1095 = vadd.f32 %v1093, %v1094
    %v1096 = vsel %vm120, %v1065, 0.0
    %v1097 = vadd.f32 %v1095, %v1096
    %v1098 = vsel %vm120, %v1067, 0.0
    %v1099 = vadd.f32 %v1097, %v1098
    %v1100 = vsel %vm120, %v1069, 0.0
    %v1101 = vadd.f32 %v1099, %v1100
    %v1102 = vsel %vm120, %v1071, 0.0
    %v1103 = vadd.f32 %v1101, %v1102
    %v1104 = vsel %vm120, %v1042, 0.0
    %v1105 = vsel %vm120, %v1044, 0.0
    %v1106 = vadd.f32 %v1104, %v1105
    %v1107 = vsel %vm120, %v1046, 0.0
    %v1108 = vadd.f32 %v1106, %v1107
    %v1109 = vsel %vm120, %v1048, 0.0
    %v1110 = vadd.f32 %v1108, %v1109
    %v1111 = vsel %vm120, %v1050, 0.0
    %v1112 = vadd.f32 %v1110, %v1111
    %v1113 = vsel %vm120, %v1052, 0.0
    %v1114 = vadd.f32 %v1112, %v1113
    %v1115 = vsel %vm120, %v1054, 0.0
    %v1116 = vadd.f32 %v1114, %v1115
    %v1117 = vsel %vm120, %v1056, 0.0
    %v1118 = vadd.f32 %v1116, %v1117
    %v1119 = vsel %vm120, %v1058, 0.0
    %v1120 = vadd.f32 %v1118, %v1119
    %v1121 = vsel %vm120, %v1060, 0.0
    %v1122 = vadd.f32 %v1120, %v1121
    %v1123 = vsel %vm120, %v1062, 0.0
    %v1124 = vadd.f32 %v1122, %v1123
    %v1125 = vsel %vm120, %v1064, 0.0
    %v1126 = vadd.f32 %v1124, %v1125
    %v1127 = vsel %vm120, %v1066, 0.0
    %v1128 = vadd.f32 %v1126, %v1127
    %v1129 = vsel %vm120, %v1068, 0.0
    %v1130 = vadd.f32 %v1128, %v1129
    %v1131 = vsel %vm120, %v1070, 0.0
    %v1132 = vadd.f32 %v1130, %v1131
    %v1133 = vsel %vm120, %v1072, 0.0
    %v1134 = vadd.f32 %v1132, %v1133
    %v1135 = vmul.f32 %v1041, %v849
    %v1136 = vmul.f32 %v1042, %v850
    %v1137 = vmul.f32 %v1043, %v851
    %v1138 = vmul.f32 %v1044, %v852
    %v1139 = vmul.f32 %v1045, %v853
    %v1140 = vmul.f32 %v1046, %v854
    %v1141 = vmul.f32 %v1047, %v855
    %v1142 = vmul.f32 %v1048, %v856
    %v1143 = vmul.f32 %v1049, %v857
    %v1144 = vmul.f32 %v1050, %v858
    %v1145 = vmul.f32 %v1051, %v859
    %v1146 = vmul.f32 %v1052, %v860
    %v1147 = vmul.f32 %v1053, %v861
    %v1148 = vmul.f32 %v1054, %v862
    %v1149 = vmul.f32 %v1055, %v863
    %v1150 = vmul.f32 %v1056, %v864
    %v1151 = vmul.f32 %v1057, %v865
    %v1152 = vmul.f32 %v1058, %v866
    %v1153 = vmul.f32 %v1059, %v867
    %v1154 = vmul.f32 %v1060, %v868
    %v1155 = vmul.f32 %v1061, %v869
    %v1156 = vmul.f32 %v1062, %v870
    %v1157 = vmul.f32 %v1063, %v871
    %v1158 = vmul.f32 %v1064, %v872
    %v1159 = vmul.f32 %v1065, %v873
    %v1160 = vmul.f32 %v1066, %v874
    %v1161 = vmul.f32 %v1067, %v875
    %v1162 = vmul.f32 %v1068, %v876
    %v1163 = vmul.f32 %v1069, %v877
    %v1164 = vmul.f32 %v1070, %v878
    %v1165 = vmul.f32 %v1071, %v879
    %v1166 = vmul.f32 %v1072, %v880
    %v1167 = vsel %vm120, %v1135, 0.0
    %v1168 = vsel %vm120, %v1137, 0.0
    %v1169 = vadd.f32 %v1167, %v1168
    %v1170 = vsel %vm120, %v1139, 0.0
    %v1171 = vadd.f32 %v1169, %v1170
    %v1172 = vsel %vm120, %v1141, 0.0
    %v1173 = vadd.f32 %v1171, %v1172
    %v1174 = vsel %vm120, %v1143, 0.0
    %v1175 = vadd.f32 %v1173, %v1174
    %v1176 = vsel %vm120, %v1145, 0.0
    %v1177 = vadd.f32 %v1175, %v1176
    %v1178 = vsel %vm120, %v1147, 0.0
    %v1179 = vadd.f32 %v1177, %v1178
    %v1180 = vsel %vm120, %v1149, 0.0
    %v1181 = vadd.f32 %v1179, %v1180
    %v1182 = vsel %vm120, %v1151, 0.0
    %v1183 = vadd.f32 %v1181, %v1182
    %v1184 = vsel %vm120, %v1153, 0.0
    %v1185 = vadd.f32 %v1183, %v1184
    %v1186 = vsel %vm120, %v1155, 0.0
    %v1187 = vadd.f32 %v1185, %v1186
    %v1188 = vsel %vm120, %v1157, 0.0
    %v1189 = vadd.f32 %v1187, %v1188
    %v1190 = vsel %vm120, %v1159, 0.0
    %v1191 = vadd.f32 %v1189, %v1190
    %v1192 = vsel %vm120, %v1161, 0.0
    %v1193 = vadd.f32 %v1191, %v1192
    %v1194 = vsel %vm120, %v1163, 0.0
    %v1195 = vadd.f32 %v1193, %v1194
    %v1196 = vsel %vm120, %v1165, 0.0
    %v1197 = vadd.f32 %v1195, %v1196
    %v1198 = vsel %vm120, %v1136, 0.0
    %v1199 = vsel %vm120, %v1138, 0.0
    %v1200 = vadd.f32 %v1198, %v1199
    %v1201 = vsel %vm120, %v1140, 0.0
    %v1202 = vadd.f32 %v1200, %v1201
    %v1203 = vsel %vm120, %v1142, 0.0
    %v1204 = vadd.f32 %v1202, %v1203
    %v1205 = vsel %vm120, %v1144, 0.0
    %v1206 = vadd.f32 %v1204, %v1205
    %v1207 = vsel %vm120, %v1146, 0.0
    %v1208 = vadd.f32 %v1206, %v1207
    %v1209 = vsel %vm120, %v1148, 0.0
    %v1210 = vadd.f32 %v1208, %v1209
    %v1211 = vsel %vm120, %v1150, 0.0
    %v1212 = vadd.f32 %v1210, %v1211
    %v1213 = vsel %vm120, %v1152, 0.0
    %v1214 = vadd.f32 %v1212, %v1213
    %v1215 = vsel %vm120, %v1154, 0.0
    %v1216 = vadd.f32 %v1214, %v1215
    %v1217 = vsel %vm120, %v1156, 0.0
    %v1218 = vadd.f32 %v1216, %v1217
    %v1219 = vsel %vm120, %v1158, 0.0
    %v1220 = vadd.f32 %v1218, %v1219
    %v1221 = vsel %vm120, %v1160, 0.0
    %v1222 = vadd.f32 %v1220, %v1221
    %v1223 = vsel %vm120, %v1162, 0.0
    %v1224 = vadd.f32 %v1222, %v1223
    %v1225 = vsel %vm120, %v1164, 0.0
    %v1226 = vadd.f32 %v1224, %v1225
    %v1227 = vsel %vm120, %v1166, 0.0
    %v1228 = vadd.f32 %v1226, %v1227
    %vm1229 = vcmp.gt.f32.partialorder %v44, 0.0
    %vm1230 = vcmp.gt.f32.partialorder %v45, 0.0
    %vm1231 = vcmp.gt.f32.partialorder %v46, 0.0
    %vm1232 = vcmp.gt.f32.partialorder %v47, 0.0
    %vm1233 = vcmp.gt.f32.partialorder %v48, 0.0
    %vm1234 = vcmp.gt.f32.partialorder %v49, 0.0
    %vm1235 = vcmp.gt.f32.partialorder %v50, 0.0
    %vm1236 = vcmp.gt.f32.partialorder %v51, 0.0
    %vm1237 = vcmp.gt.f32.partialorder %v52, 0.0
    %vm1238 = vcmp.gt.f32.partialorder %v53, 0.0
    %vm1239 = vcmp.gt.f32.partialorder %v54, 0.0
    %vm1240 = vcmp.gt.f32.partialorder %v55, 0.0
    %vm1241 = vcmp.gt.f32.partialorder %v56, 0.0
    %vm1242 = vcmp.gt.f32.partialorder %v57, 0.0
    %vm1243 = vcmp.gt.f32.partialorder %v58, 0.0
    %vm1244 = vcmp.gt.f32.partialorder %v59, 0.0
    %vm1245 = vcmp.gt.f32.partialorder %v60, 0.0
    %vm1246 = vcmp.gt.f32.partialorder %v61, 0.0
    %vm1247 = vcmp.gt.f32.partialorder %v62, 0.0
    %vm1248 = vcmp.gt.f32.partialorder %v63, 0.0
    %vm1249 = vcmp.gt.f32.partialorder %v64, 0.0
    %vm1250 = vcmp.gt.f32.partialorder %v65, 0.0
    %vm1251 = vcmp.gt.f32.partialorder %v66, 0.0
    %vm1252 = vcmp.gt.f32.partialorder %v67, 0.0
    %vm1253 = vcmp.gt.f32.partialorder %v68, 0.0
    %vm1254 = vcmp.gt.f32.partialorder %v69, 0.0
    %vm1255 = vcmp.gt.f32.partialorder %v70, 0.0
    %vm1256 = vcmp.gt.f32.partialorder %v71, 0.0
    %vm1257 = vcmp.gt.f32.partialorder %v72, 0.0
    %vm1258 = vcmp.gt.f32.partialorder %v73, 0.0
    %vm1259 = vcmp.gt.f32.partialorder %v74, 0.0
    %vm1260 = vcmp.gt.f32.partialorder %v75, 0.0
    %v1261 = vsel %vm1229, 1, 0
    %v1262 = vsel %vm1230, 1, 0
    %v1263 = vsel %vm1231, 1, 0
    %v1264 = vsel %vm1232, 1, 0
    %v1265 = vsel %vm1233, 1, 0
    %v1266 = vsel %vm1234, 1, 0
    %v1267 = vsel %vm1235, 1, 0
    %v1268 = vsel %vm1236, 1, 0
    %v1269 = vsel %vm1237, 1, 0
    %v1270 = vsel %vm1238, 1, 0
    %v1271 = vsel %vm1239, 1, 0
    %v1272 = vsel %vm1240, 1, 0
    %v1273 = vsel %vm1241, 1, 0
    %v1274 = vsel %vm1242, 1, 0
    %v1275 = vsel %vm1243, 1, 0
    %v1276 = vsel %vm1244, 1, 0
    %v1277 = vsel %vm1245, 1, 0
    %v1278 = vsel %vm1246, 1, 0
    %v1279 = vsel %vm1247, 1, 0
    %v1280 = vsel %vm1248, 1, 0
    %v1281 = vsel %vm1249, 1, 0
    %v1282 = vsel %vm1250, 1, 0
    %v1283 = vsel %vm1251, 1, 0
    %v1284 = vsel %vm1252, 1, 0
    %v1285 = vsel %vm1253, 1, 0
    %v1286 = vsel %vm1254, 1, 0
    %v1287 = vsel %vm1255, 1, 0
    %v1288 = vsel %vm1256, 1, 0
    %v1289 = vsel %vm1257, 1, 0
    %v1290 = vsel %vm1258, 1, 0
    %v1291 = vsel %vm1259, 1, 0
    %v1292 = vsel %vm1260, 1, 0
    %1293 = vset.pattern.permute.xlu0 0
    %1294 = vperm.xlu0 %1293, %v1261
    %v1295 = vpop.permute.xlu0 %1294
    %1296 = vset.pattern.permute.xlu0 0
    %1297 = vperm.xlu0 %1296, %v1262
    %v1298 = vpop.permute.xlu0 %1297
    %1299 = vset.pattern.permute.xlu0 0
    %1300 = vperm.xlu0 %1299, %v1263
    %v1301 = vpop.permute.xlu0 %1300
    %1302 = vset.pattern.permute.xlu0 0
    %1303 = vperm.xlu0 %1302, %v1264
    %v1304 = vpop.permute.xlu0 %1303
    %1305 = vset.pattern.permute.xlu0 0
    %1306 = vperm.xlu0 %1305, %v1265
    %v1307 = vpop.permute.xlu0 %1306
    %1308 = vset.pattern.permute.xlu0 0
    %1309 = vperm.xlu0 %1308, %v1266
    %v1310 = vpop.permute.xlu0 %1309
    %1311 = vset.pattern.permute.xlu0 0
    %1312 = vperm.xlu0 %1311, %v1267
    %v1313 = vpop.permute.xlu0 %1312
    %1314 = vset.pattern.permute.xlu0 0
    %1315 = vperm.xlu0 %1314, %v1268
    %v1316 = vpop.permute.xlu0 %1315
    %1317 = vset.pattern.permute.xlu0 0
    %1318 = vperm.xlu0 %1317, %v1269
    %v1319 = vpop.permute.xlu0 %1318
    %1320 = vset.pattern.permute.xlu0 0
    %1321 = vperm.xlu0 %1320, %v1270
    %v1322 = vpop.permute.xlu0 %1321
    %1323 = vset.pattern.permute.xlu0 0
    %1324 = vperm.xlu0 %1323, %v1271
    %v1325 = vpop.permute.xlu0 %1324
    %1326 = vset.pattern.permute.xlu0 0
    %1327 = vperm.xlu0 %1326, %v1272
    %v1328 = vpop.permute.xlu0 %1327
    %1329 = vset.pattern.permute.xlu0 0
    %1330 = vperm.xlu0 %1329, %v1273
    %v1331 = vpop.permute.xlu0 %1330
    %1332 = vset.pattern.permute.xlu0 0
    %1333 = vperm.xlu0 %1332, %v1274
    %v1334 = vpop.permute.xlu0 %1333
    %1335 = vset.pattern.permute.xlu0 0
    %1336 = vperm.xlu0 %1335, %v1275
    %v1337 = vpop.permute.xlu0 %1336
    %1338 = vset.pattern.permute.xlu0 0
    %1339 = vperm.xlu0 %1338, %v1276
    %v1340 = vpop.permute.xlu0 %1339
    %1341 = vset.pattern.permute.xlu0 0
    %1342 = vperm.xlu0 %1341, %v1277
    %v1343 = vpop.permute.xlu0 %1342
    %1344 = vset.pattern.permute.xlu0 0
    %1345 = vperm.xlu0 %1344, %v1278
    %v1346 = vpop.permute.xlu0 %1345
    %1347 = vset.pattern.permute.xlu0 0
    %1348 = vperm.xlu0 %1347, %v1279
    %v1349 = vpop.permute.xlu0 %1348
    %1350 = vset.pattern.permute.xlu0 0
    %1351 = vperm.xlu0 %1350, %v1280
    %v1352 = vpop.permute.xlu0 %1351
    %1353 = vset.pattern.permute.xlu0 0
    %1354 = vperm.xlu0 %1353, %v1281
    %v1355 = vpop.permute.xlu0 %1354
    %1356 = vset.pattern.permute.xlu0 0
    %1357 = vperm.xlu0 %1356, %v1282
    %v1358 = vpop.permute.xlu0 %1357
    %1359 = vset.pattern.permute.xlu0 0
    %1360 = vperm.xlu0 %1359, %v1283
    %v1361 = vpop.permute.xlu0 %1360
    %1362 = vset.pattern.permute.xlu0 0
    %1363 = vperm.xlu0 %1362, %v1284
    %v1364 = vpop.permute.xlu0 %1363
    %1365 = vset.pattern.permute.xlu0 0
    %1366 = vperm.xlu0 %1365, %v1285
    %v1367 = vpop.permute.xlu0 %1366
    %1368 = vset.pattern.permute.xlu0 0
    %1369 = vperm.xlu0 %1368, %v1286
    %v1370 = vpop.permute.xlu0 %1369
    %1371 = vset.pattern.permute.xlu0 0
    %1372 = vperm.xlu0 %1371, %v1287
    %v1373 = vpop.permute.xlu0 %1372
    %1374 = vset.pattern.permute.xlu0 0
    %1375 = vperm.xlu0 %1374, %v1288
    %v1376 = vpop.permute.xlu0 %1375
    %1377 = vset.pattern.permute.xlu0 0
    %1378 = vperm.xlu0 %1377, %v1289
    %v1379 = vpop.permute.xlu0 %1378
    %1380 = vset.pattern.permute.xlu0 0
    %1381 = vperm.xlu0 %1380, %v1290
    %v1382 = vpop.permute.xlu0 %1381
    %1383 = vset.pattern.permute.xlu0 0
    %1384 = vperm.xlu0 %1383, %v1291
    %v1385 = vpop.permute.xlu0 %1384
    %1386 = vset.pattern.permute.xlu0 0
    %1387 = vperm.xlu0 %1386, %v1292
    %v1388 = vpop.permute.xlu0 %1387
    %vm1389 = vcmp.eq.s32.totalorder %v1295, 1
    %vm1390 = vcmp.eq.s32.totalorder %v1298, 1
    %vm1391 = vcmp.eq.s32.totalorder %v1301, 1
    %vm1392 = vcmp.eq.s32.totalorder %v1304, 1
    %vm1393 = vcmp.eq.s32.totalorder %v1307, 1
    %vm1394 = vcmp.eq.s32.totalorder %v1310, 1
    %vm1395 = vcmp.eq.s32.totalorder %v1313, 1
    %vm1396 = vcmp.eq.s32.totalorder %v1316, 1
    %vm1397 = vcmp.eq.s32.totalorder %v1319, 1
    %vm1398 = vcmp.eq.s32.totalorder %v1322, 1
    %vm1399 = vcmp.eq.s32.totalorder %v1325, 1
    %vm1400 = vcmp.eq.s32.totalorder %v1328, 1
    %vm1401 = vcmp.eq.s32.totalorder %v1331, 1
    %vm1402 = vcmp.eq.s32.totalorder %v1334, 1
    %vm1403 = vcmp.eq.s32.totalorder %v1337, 1
    %vm1404 = vcmp.eq.s32.totalorder %v1340, 1
    %vm1405 = vcmp.eq.s32.totalorder %v1343, 1
    %vm1406 = vcmp.eq.s32.totalorder %v1346, 1
    %vm1407 = vcmp.eq.s32.totalorder %v1349, 1
    %vm1408 = vcmp.eq.s32.totalorder %v1352, 1
    %vm1409 = vcmp.eq.s32.totalorder %v1355, 1
    %vm1410 = vcmp.eq.s32.totalorder %v1358, 1
    %vm1411 = vcmp.eq.s32.totalorder %v1361, 1
    %vm1412 = vcmp.eq.s32.totalorder %v1364, 1
    %vm1413 = vcmp.eq.s32.totalorder %v1367, 1
    %vm1414 = vcmp.eq.s32.totalorder %v1370, 1
    %vm1415 = vcmp.eq.s32.totalorder %v1373, 1
    %vm1416 = vcmp.eq.s32.totalorder %v1376, 1
    %vm1417 = vcmp.eq.s32.totalorder %v1379, 1
    %vm1418 = vcmp.eq.s32.totalorder %v1382, 1
    %vm1419 = vcmp.eq.s32.totalorder %v1385, 1
    %vm1420 = vcmp.eq.s32.totalorder %v1388, 1
    %v1421 = vsel %vm1389, %v849, -1e+30
    %v1422 = vsel %vm1390, %v850, -1e+30
    %v1423 = vsel %vm1391, %v851, -1e+30
    %v1424 = vsel %vm1392, %v852, -1e+30
    %v1425 = vsel %vm1393, %v853, -1e+30
    %v1426 = vsel %vm1394, %v854, -1e+30
    %v1427 = vsel %vm1395, %v855, -1e+30
    %v1428 = vsel %vm1396, %v856, -1e+30
    %v1429 = vsel %vm1397, %v857, -1e+30
    %v1430 = vsel %vm1398, %v858, -1e+30
    %v1431 = vsel %vm1399, %v859, -1e+30
    %v1432 = vsel %vm1400, %v860, -1e+30
    %v1433 = vsel %vm1401, %v861, -1e+30
    %v1434 = vsel %vm1402, %v862, -1e+30
    %v1435 = vsel %vm1403, %v863, -1e+30
    %v1436 = vsel %vm1404, %v864, -1e+30
    %v1437 = vsel %vm1405, %v865, -1e+30
    %v1438 = vsel %vm1406, %v866, -1e+30
    %v1439 = vsel %vm1407, %v867, -1e+30
    %v1440 = vsel %vm1408, %v868, -1e+30
    %v1441 = vsel %vm1409, %v869, -1e+30
    %v1442 = vsel %vm1410, %v870, -1e+30
    %v1443 = vsel %vm1411, %v871, -1e+30
    %v1444 = vsel %vm1412, %v872, -1e+30
    %v1445 = vsel %vm1413, %v873, -1e+30
    %v1446 = vsel %vm1414, %v874, -1e+30
    %v1447 = vsel %vm1415, %v875, -1e+30
    %v1448 = vsel %vm1416, %v876, -1e+30
    %v1449 = vsel %vm1417, %v877, -1e+30
    %v1450 = vsel %vm1418, %v878, -1e+30
    %v1451 = vsel %vm1419, %v879, -1e+30
    %v1452 = vsel %vm1420, %v880, -1e+30
    %v1453 = vsel %vm120, %v1421, -inf
    %v1454 = vsel %vm120, %v1423, -inf
    %v1455 = vsel %vm120, %v1425, -inf
    %v1456 = vmax.f32 %v1453, %v1455
    %v1457 = vsel %vm120, %v1427, -inf
    %v1458 = vmax.f32 %v1454, %v1457
    %v1459 = vsel %vm120, %v1429, -inf
    %v1460 = vmax.f32 %v1456, %v1459
    %v1461 = vsel %vm120, %v1431, -inf
    %v1462 = vmax.f32 %v1458, %v1461
    %v1463 = vsel %vm120, %v1433, -inf
    %v1464 = vmax.f32 %v1460, %v1463
    %v1465 = vsel %vm120, %v1435, -inf
    %v1466 = vmax.f32 %v1462, %v1465
    %v1467 = vsel %vm120, %v1437, -inf
    %v1468 = vmax.f32 %v1464, %v1467
    %v1469 = vsel %vm120, %v1439, -inf
    %v1470 = vmax.f32 %v1466, %v1469
    %v1471 = vsel %vm120, %v1441, -inf
    %v1472 = vmax.f32 %v1468, %v1471
    %v1473 = vsel %vm120, %v1443, -inf
    %v1474 = vmax.f32 %v1470, %v1473
    %v1475 = vsel %vm120, %v1445, -inf
    %v1476 = vmax.f32 %v1472, %v1475
    %v1477 = vsel %vm120, %v1447, -inf
    %v1478 = vmax.f32 %v1474, %v1477
    %v1479 = vsel %vm120, %v1449, -inf
    %v1480 = vmax.f32 %v1476, %v1479
    %v1481 = vsel %vm120, %v1451, -inf
    %v1482 = vmax.f32 %v1478, %v1481
    %v1483 = vmax.f32 %v1480, %v1482
    %v1484 = vsel %vm120, %v1422, -inf
    %v1485 = vsel %vm120, %v1424, -inf
    %v1486 = vsel %vm120, %v1426, -inf
    %v1487 = vmax.f32 %v1484, %v1486
    %v1488 = vsel %vm120, %v1428, -inf
    %v1489 = vmax.f32 %v1485, %v1488
    %v1490 = vsel %vm120, %v1430, -inf
    %v1491 = vmax.f32 %v1487, %v1490
    %v1492 = vsel %vm120, %v1432, -inf
    %v1493 = vmax.f32 %v1489, %v1492
    %v1494 = vsel %vm120, %v1434, -inf
    %v1495 = vmax.f32 %v1491, %v1494
    %v1496 = vsel %vm120, %v1436, -inf
    %v1497 = vmax.f32 %v1493, %v1496
    %v1498 = vsel %vm120, %v1438, -inf
    %v1499 = vmax.f32 %v1495, %v1498
    %v1500 = vsel %vm120, %v1440, -inf
    %v1501 = vmax.f32 %v1497, %v1500
    %v1502 = vsel %vm120, %v1442, -inf
    %v1503 = vmax.f32 %v1499, %v1502
    %v1504 = vsel %vm120, %v1444, -inf
    %v1505 = vmax.f32 %v1501, %v1504
    %v1506 = vsel %vm120, %v1446, -inf
    %v1507 = vmax.f32 %v1503, %v1506
    %v1508 = vsel %vm120, %v1448, -inf
    %v1509 = vmax.f32 %v1505, %v1508
    %v1510 = vsel %vm120, %v1450, -inf
    %v1511 = vmax.f32 %v1507, %v1510
    %v1512 = vsel %vm120, %v1452, -inf
    %v1513 = vmax.f32 %v1509, %v1512
    %v1514 = vmax.f32 %v1511, %v1513
    %v1515 = vsel %vm1389, %v849, 1e+30
    %v1516 = vsel %vm1390, %v850, 1e+30
    %v1517 = vsel %vm1391, %v851, 1e+30
    %v1518 = vsel %vm1392, %v852, 1e+30
    %v1519 = vsel %vm1393, %v853, 1e+30
    %v1520 = vsel %vm1394, %v854, 1e+30
    %v1521 = vsel %vm1395, %v855, 1e+30
    %v1522 = vsel %vm1396, %v856, 1e+30
    %v1523 = vsel %vm1397, %v857, 1e+30
    %v1524 = vsel %vm1398, %v858, 1e+30
    %v1525 = vsel %vm1399, %v859, 1e+30
    %v1526 = vsel %vm1400, %v860, 1e+30
    %v1527 = vsel %vm1401, %v861, 1e+30
    %v1528 = vsel %vm1402, %v862, 1e+30
    %v1529 = vsel %vm1403, %v863, 1e+30
    %v1530 = vsel %vm1404, %v864, 1e+30
    %v1531 = vsel %vm1405, %v865, 1e+30
    %v1532 = vsel %vm1406, %v866, 1e+30
    %v1533 = vsel %vm1407, %v867, 1e+30
    %v1534 = vsel %vm1408, %v868, 1e+30
    %v1535 = vsel %vm1409, %v869, 1e+30
    %v1536 = vsel %vm1410, %v870, 1e+30
    %v1537 = vsel %vm1411, %v871, 1e+30
    %v1538 = vsel %vm1412, %v872, 1e+30
    %v1539 = vsel %vm1413, %v873, 1e+30
    %v1540 = vsel %vm1414, %v874, 1e+30
    %v1541 = vsel %vm1415, %v875, 1e+30
    %v1542 = vsel %vm1416, %v876, 1e+30
    %v1543 = vsel %vm1417, %v877, 1e+30
    %v1544 = vsel %vm1418, %v878, 1e+30
    %v1545 = vsel %vm1419, %v879, 1e+30
    %v1546 = vsel %vm1420, %v880, 1e+30
    %v1547 = vsel %vm120, %v1515, inf
    %v1548 = vsel %vm120, %v1517, inf
    %v1549 = vsel %vm120, %v1519, inf
    %v1550 = vmin.f32 %v1547, %v1549
    %v1551 = vsel %vm120, %v1521, inf
    %v1552 = vmin.f32 %v1548, %v1551
    %v1553 = vsel %vm120, %v1523, inf
    %v1554 = vmin.f32 %v1550, %v1553
    %v1555 = vsel %vm120, %v1525, inf
    %v1556 = vmin.f32 %v1552, %v1555
    %v1557 = vsel %vm120, %v1527, inf
    %v1558 = vmin.f32 %v1554, %v1557
    %v1559 = vsel %vm120, %v1529, inf
    %v1560 = vmin.f32 %v1556, %v1559
    %v1561 = vsel %vm120, %v1531, inf
    %v1562 = vmin.f32 %v1558, %v1561
    %v1563 = vsel %vm120, %v1533, inf
    %v1564 = vmin.f32 %v1560, %v1563
    %v1565 = vsel %vm120, %v1535, inf
    %v1566 = vmin.f32 %v1562, %v1565
    %v1567 = vsel %vm120, %v1537, inf
    %v1568 = vmin.f32 %v1564, %v1567
    %v1569 = vsel %vm120, %v1539, inf
    %v1570 = vmin.f32 %v1566, %v1569
    %v1571 = vsel %vm120, %v1541, inf
    %v1572 = vmin.f32 %v1568, %v1571
    %v1573 = vsel %vm120, %v1543, inf
    %v1574 = vmin.f32 %v1570, %v1573
    %v1575 = vsel %vm120, %v1545, inf
    %v1576 = vmin.f32 %v1572, %v1575
    %v1577 = vmin.f32 %v1574, %v1576
    %v1578 = vsel %vm120, %v1516, inf
    %v1579 = vsel %vm120, %v1518, inf
    %v1580 = vsel %vm120, %v1520, inf
    %v1581 = vmin.f32 %v1578, %v1580
    %v1582 = vsel %vm120, %v1522, inf
    %v1583 = vmin.f32 %v1579, %v1582
    %v1584 = vsel %vm120, %v1524, inf
    %v1585 = vmin.f32 %v1581, %v1584
    %v1586 = vsel %vm120, %v1526, inf
    %v1587 = vmin.f32 %v1583, %v1586
    %v1588 = vsel %vm120, %v1528, inf
    %v1589 = vmin.f32 %v1585, %v1588
    %v1590 = vsel %vm120, %v1530, inf
    %v1591 = vmin.f32 %v1587, %v1590
    %v1592 = vsel %vm120, %v1532, inf
    %v1593 = vmin.f32 %v1589, %v1592
    %v1594 = vsel %vm120, %v1534, inf
    %v1595 = vmin.f32 %v1591, %v1594
    %v1596 = vsel %vm120, %v1536, inf
    %v1597 = vmin.f32 %v1593, %v1596
    %v1598 = vsel %vm120, %v1538, inf
    %v1599 = vmin.f32 %v1595, %v1598
    %v1600 = vsel %vm120, %v1540, inf
    %v1601 = vmin.f32 %v1597, %v1600
    %v1602 = vsel %vm120, %v1542, inf
    %v1603 = vmin.f32 %v1599, %v1602
    %v1604 = vsel %vm120, %v1544, inf
    %v1605 = vmin.f32 %v1601, %v1604
    %v1606 = vsel %vm120, %v1546, inf
    %v1607 = vmin.f32 %v1603, %v1606
    %v1608 = vmin.f32 %v1605, %v1607
    %v1609 = vmax.f32 %v76, 1.0
    %v1610 = vmax.f32 %v77, 1.0
    %v1611 = vrcp.pop %v1609
    %v1612 = vmul.f32 1.0, %v1611
    %v1613 = vrcp.pop %v1610
    %v1614 = vmul.f32 1.0, %v1613
    %1616 = vset.pattern.permute.xlu0 0
    %1617 = vperm.xlu0 %1616, %v1612
    %v1618 = vpop.permute.xlu0 %1617
    %1621 = vset.pattern.permute.xlu0 0
    %1622 = vperm.xlu0 %1621, %v1614
    %v1623 = vpop.permute.xlu0 %1622
    %v1625 = vmul.f32 %v1103, %v1618
    %v1626 = vmul.f32 %v1134, %v1623
    %v1627 = vmul.f32 %v1197, %v1618
    %v1628 = vmul.f32 %v1228, %v1623
    %v1629 = vmul.f32 %v1625, %v1625
    %v1630 = vmul.f32 %v1626, %v1626
    %v1631 = vsub.f32 %v1627, %v1629
    %v1632 = vsub.f32 %v1628, %v1630
    %v1633 = vmax.f32 %v1631, 0.0
    %v1634 = vmax.f32 %v1632, 0.0
    %v1635 = vadd.f32 %v1633, 1e-30
    %v1636 = vadd.f32 %v1634, 1e-30
    %v1637 = vrsqrt.pop %v1635
    %v1638 = vmul.f32 %v1635, %v1637
    %vm1639 = vcmp.eq.f32.partialorder %v1635, inf
    %v1640 = vsel %vm1639, %v1635, %v1638
    %vm1641 = vcmp.eq.f32.partialorder %v1635, 0.0
    %v1642 = vand.u32 %v1635, 2147483648
    %v1643 = vsel %vm1641, %v1642, %v1640
    %v1644 = vrsqrt.pop %v1636
    %v1645 = vmul.f32 %v1636, %v1644
    %vm1646 = vcmp.eq.f32.partialorder %v1636, inf
    %v1647 = vsel %vm1646, %v1636, %v1645
    %vm1648 = vcmp.eq.f32.partialorder %v1636, 0.0
    %v1649 = vand.u32 %v1636, 2147483648
    %v1650 = vsel %vm1648, %v1649, %v1647
    %v1651 = vadd.f32 %v76, 1.0
    %v1652 = vadd.f32 %v77, 1.0
    %v1653 = vlog2.pop %v1651
    %v1654 = vmul.f32 %v1653, 0.6931472
    %v1655 = vlog2.pop %v1652
    %v1656 = vmul.f32 %v1655, 0.6931472
    %vm1657 = vcmp.gt.f32.partialorder %v1654, 0.0
    %vm1658 = vcmp.gt.f32.partialorder %v1656, 0.0
    %v1659 = vsel %vm1657, %v1654, 1.0
    %v1660 = vsel %vm1658, %v1656, 1.0
    %v1661 = vrcp.pop %v1659
    %v1662 = vmul.f32 1.0, %v1661
    %v1663 = vrcp.pop %v1660
    %v1664 = vmul.f32 1.0, %v1663
    %vm1665 = vcmp.gt.f32.partialorder %v76, 0.0
    %vm1666 = vcmp.gt.f32.partialorder %v77, 0.0
    %1669 = vrot.lane.b32.xlu0 %v1483, 32
    %v1670 = vpop.permute.xlu0 %1669
    %1671 = vrot.lane.b32.xlu0 %v1514, 32
    %v1672 = vpop.permute.xlu0 %1671
    %1677 = vrot.lane.b32.xlu0 %v1577, 64
    %v1678 = vpop.permute.xlu0 %1677
    %1679 = vrot.lane.b32.xlu0 %v1608, 64
    %v1680 = vpop.permute.xlu0 %1679
    %1685 = vrot.lane.b32.xlu0 %v1643, 96
    %v1686 = vpop.permute.xlu0 %1685
    %1687 = vrot.lane.b32.xlu0 %v1650, 96
    %v1688 = vpop.permute.xlu0 %1687
    %v1691 = vsel %vm120, %v1625, %v1670
    %v1692 = vsel %vm120, %v1626, %v1672
    %vm1693 = vcmask 523264
    %v1694 = vsel %vm1693, %v1691, %v1678
    %v1695 = vsel %vm1693, %v1692, %v1680
    %vm1696 = vcmask 785408
    %v1697 = vsel %vm1696, %v1694, %v1686
    %v1698 = vsel %vm1696, %v1695, %v1688
    %v1699 = vsel %vm1665, 1, 0
    %v1700 = vsel %vm1666, 1, 0
    %1701 = vset.pattern.permute.xlu0 0
    %1702 = vperm.xlu0 %1701, %v1699
    %v1703 = vpop.permute.xlu0 %1702
    %1704 = vset.pattern.permute.xlu0 0
    %1705 = vperm.xlu0 %1704, %v1700
    %v1706 = vpop.permute.xlu0 %1705
    %vm1707 = vcmp.eq.s32.totalorder %v1703, 1
    %vm1708 = vcmp.eq.s32.totalorder %v1706, 1
    %v1709 = vsel %vm1707, %v1697, 0.0
    %v1710 = vsel %vm1708, %v1698, 0.0
    %v1711 = vld [vmem:[%s6] sm:$0xff]
    %v1712 = vld [vmem:[%s6 + $0x8] sm:$0xff]
    %v1713 = vld [vmem:[%s6 + $0x10] sm:$0xff]
    %v1714 = vld [vmem:[%s6 + $0x18] sm:$0xff]
    %v1715 = vld [vmem:[%s6 + $0x20] sm:$0xff]
    %v1716 = vld [vmem:[%s6 + $0x28] sm:$0xff]
    %v1717 = vld [vmem:[%s6 + $0x30] sm:$0xff]
    %v1718 = vld [vmem:[%s6 + $0x38] sm:$0xff]
    %v1719 = vld [vmem:[%s6 + $0x40] sm:$0xff]
    %v1720 = vld [vmem:[%s6 + $0x48] sm:$0xff]
    %v1721 = vld [vmem:[%s6 + $0x50] sm:$0xff]
    %v1722 = vld [vmem:[%s6 + $0x58] sm:$0xff]
    %v1723 = vld [vmem:[%s6 + $0x60] sm:$0xff]
    %v1724 = vld [vmem:[%s6 + $0x68] sm:$0xff]
    %v1725 = vld [vmem:[%s6 + $0x70] sm:$0xff]
    %v1726 = vld [vmem:[%s6 + $0x78] sm:$0xff]
    %v1727 = vld [vmem:[%s6 + $0x80] sm:$0xff]
    %v1728 = vld [vmem:[%s6 + $0x88] sm:$0xff]
    %v1729 = vld [vmem:[%s6 + $0x90] sm:$0xff]
    %v1730 = vld [vmem:[%s6 + $0x98] sm:$0xff]
    %v1731 = vld [vmem:[%s6 + $0xa0] sm:$0xff]
    %v1732 = vld [vmem:[%s6 + $0xa8] sm:$0xff]
    %v1733 = vld [vmem:[%s6 + $0xb0] sm:$0xff]
    %v1734 = vld [vmem:[%s6 + $0xb8] sm:$0xff]
    %v1735 = vld [vmem:[%s6 + $0xc0] sm:$0xff]
    %v1736 = vld [vmem:[%s6 + $0xc8] sm:$0xff]
    %v1737 = vld [vmem:[%s6 + $0xd0] sm:$0xff]
    %v1738 = vld [vmem:[%s6 + $0xd8] sm:$0xff]
    %v1739 = vld [vmem:[%s6 + $0xe0] sm:$0xff]
    %v1740 = vld [vmem:[%s6 + $0xe8] sm:$0xff]
    %v1741 = vld [vmem:[%s6 + $0xf0] sm:$0xff]
    %v1742 = vld [vmem:[%s6 + $0xf8] sm:$0xff]
    %v1743 = vld [vmem:[%s6 + $0x100] sm:$0xff]
    %v1744 = vld [vmem:[%s6 + $0x108] sm:$0xff]
    %v1745 = vld [vmem:[%s6 + $0x110] sm:$0xff]
    %v1746 = vld [vmem:[%s6 + $0x118] sm:$0xff]
    %v1747 = vld [vmem:[%s6 + $0x120] sm:$0xff]
    %v1748 = vld [vmem:[%s6 + $0x128] sm:$0xff]
    %v1749 = vld [vmem:[%s6 + $0x130] sm:$0xff]
    %v1750 = vld [vmem:[%s6 + $0x138] sm:$0xff]
    %v1751 = vld [vmem:[%s6 + $0x140] sm:$0xff]
    %v1752 = vld [vmem:[%s6 + $0x148] sm:$0xff]
    %v1753 = vld [vmem:[%s6 + $0x150] sm:$0xff]
    %v1754 = vld [vmem:[%s6 + $0x158] sm:$0xff]
    %v1755 = vld [vmem:[%s6 + $0x160] sm:$0xff]
    %v1756 = vld [vmem:[%s6 + $0x168] sm:$0xff]
    %v1757 = vld [vmem:[%s6 + $0x170] sm:$0xff]
    %v1758 = vld [vmem:[%s6 + $0x178] sm:$0xff]
    %v1759 = vld [vmem:[%s6 + $0x180] sm:$0xff]
    %v1760 = vld [vmem:[%s6 + $0x188] sm:$0xff]
    %v1761 = vld [vmem:[%s6 + $0x190] sm:$0xff]
    %v1762 = vld [vmem:[%s6 + $0x198] sm:$0xff]
    %1763 = vmatprep.subr.mxu0 0.0
    %1764 = vmatpush1.msra.mxu0 %v1715
    %1765 = vmatprep.subr.mxu0 0.0
    %1766 = vmatpush1.msra.mxu0 %v1716
    %1767 = vmatprep.subr.mxu0 0.0
    %1768 = vmatpush1.msra.mxu0 %v1717
    %1769 = vmatprep.subr.mxu0 0.0
    %1770 = vmatpush1.msra.mxu0 %v1718
    %1771 = vmatprep.subr.mxu0 0.0
    %1772 = vmatpush1.msra.mxu0 %v1719
    %1773 = vmatprep.subr.mxu0 0.0
    %1774 = vmatpush1.msra.mxu0 %v1720
    %1775 = vmatprep.subr.mxu0 0.0
    %1776 = vmatpush1.msra.mxu0 %v1721
    %1777 = vmatprep.subr.mxu0 0.0
    %1778 = vmatpush1.msra.mxu0 %v1722
    %1779 = vmatprep.subr.mxu0 0.0
    %1780 = vmatpush1.msra.mxu0 %v1723
    %1781 = vmatprep.subr.mxu0 0.0
    %1782 = vmatpush1.msra.mxu0 %v1724
    %1783 = vmatprep.subr.mxu0 0.0
    %1784 = vmatpush1.msra.mxu0 %v1725
    %1785 = vmatprep.subr.mxu0 0.0
    %1786 = vmatpush1.msra.mxu0 %v1726
    %1787 = vmatprep.subr.mxu0 0.0
    %1788 = vmatpush1.msra.mxu0 %v1727
    %1789 = vmatprep.subr.mxu0 0.0
    %1790 = vmatpush1.msra.mxu0 %v1728
    %1791 = vmatprep.subr.mxu0 0.0
    %1792 = vmatpush1.msra.mxu0 %v1729
    %1793 = vmatprep.subr.mxu0 0.0
    %1794 = vmatpush1.msra.mxu0 %v1730
    %1795 = vmatprep.subr.mxu0 0.0
    %1796 = vmatpush1.msra.mxu0 0.0
    %1797 = vmatprep.subr.mxu0 0.0
    %1798 = vmatpush1.msra.mxu0 0.0
    %1799 = vmatprep.subr.mxu0 0.0
    %1800 = vmatpush1.msra.mxu0 0.0
    %1801 = vmatprep.subr.mxu0 0.0
    %1802 = vmatpush1.msra.mxu0 0.0
    %1803 = vmatprep.subr.mxu0 0.0
    %1804 = vmatpush1.msra.mxu0 0.0
    %1805 = vmatprep.subr.mxu0 0.0
    %1806 = vmatpush1.msra.mxu0 0.0
    %1807 = vmatprep.subr.mxu0 0.0
    %1808 = vmatpush1.msra.mxu0 0.0
    %1809 = vmatprep.subr.mxu0 0.0
    %1810 = vmatpush1.msra.mxu0 0.0
    %1811 = vmatprep.subr.mxu0 0.0
    %1812 = vmatpush1.msra.mxu0 0.0
    %1813 = vmatprep.subr.mxu0 0.0
    %1814 = vmatpush1.msra.mxu0 0.0
    %1815 = vmatprep.subr.mxu0 0.0
    %1816 = vmatpush1.msra.mxu0 0.0
    %1817 = vmatprep.subr.mxu0 0.0
    %1818 = vmatpush1.msra.mxu0 0.0
    %1819 = vmatprep.subr.mxu0 0.0
    %1820 = vmatpush1.msra.mxu0 0.0
    %1821 = vmatprep.subr.mxu0 0.0
    %1822 = vmatpush1.msra.mxu0 0.0
    %1823 = vmatprep.subr.mxu0 0.0
    %1824 = vmatpush1.msra.mxu0 0.0
    %1825 = vmatprep.subr.mxu0 0.0
    %1826 = vmatpush1.msra.mxu0 0.0
    %1827 = vmatprep.mubr.f32.mxu0 0.0
    %1828 = vmatmul.mubr.f32.gmra.mrb[0].mxu0 %v1709
    %v1829 = vpop.f32.mrb[0].mxu0
    %v1830 = vadd.f32 0.0, %v1829
    %v1831 = vpop.f32.mrb[0].mxu0
    %1832 = vmatprep.mubr.f32.mxu0 0.0
    %1833 = vmatmul.mubr.f32.gmra.mrb[0].mxu0 %v1710
    %v1834 = vpop.f32.mrb[0].mxu0
    %v1835 = vadd.f32 0.0, %v1834
    %v1836 = vpop.f32.mrb[0].mxu0
    %1837 = vdwg.mxu0
    %1838 = vmatprep.subr.mxu0 0.0
    %1839 = vmatpush1.msra.mxu0 %v1711
    %1840 = vmatprep.subr.mxu0 0.0
    %1841 = vmatpush1.msra.mxu0 %v1712
    %1842 = vmatprep.subr.mxu0 0.0
    %1843 = vmatpush1.msra.mxu0 %v1713
    %1844 = vmatprep.subr.mxu0 0.0
    %1845 = vmatpush1.msra.mxu0 %v1714
    %1846 = vmatprep.subr.mxu0 0.0
    %1847 = vmatpush1.msra.mxu0 0.0
    %1848 = vmatprep.subr.mxu0 0.0
    %1849 = vmatpush1.msra.mxu0 0.0
    %1850 = vmatprep.subr.mxu0 0.0
    %1851 = vmatpush1.msra.mxu0 0.0
    %1852 = vmatprep.subr.mxu0 0.0
    %1853 = vmatpush1.msra.mxu0 0.0
    %1854 = vmatprep.subr.mxu0 0.0
    %1855 = vmatpush1.msra.mxu0 0.0
    %1856 = vmatprep.subr.mxu0 0.0
    %1857 = vmatpush1.msra.mxu0 0.0
    %1858 = vmatprep.subr.mxu0 0.0
    %1859 = vmatpush1.msra.mxu0 0.0
    %1860 = vmatprep.subr.mxu0 0.0
    %1861 = vmatpush1.msra.mxu0 0.0
    %1862 = vmatprep.subr.mxu0 0.0
    %1863 = vmatpush1.msra.mxu0 0.0
    %1864 = vmatprep.subr.mxu0 0.0
    %1865 = vmatpush1.msra.mxu0 0.0
    %1866 = vmatprep.subr.mxu0 0.0
    %1867 = vmatpush1.msra.mxu0 0.0
    %1868 = vmatprep.subr.mxu0 0.0
    %1869 = vmatpush1.msra.mxu0 0.0
    %1870 = vmatprep.subr.mxu0 0.0
    %1871 = vmatpush1.msra.mxu0 0.0
    %1872 = vmatprep.subr.mxu0 0.0
    %1873 = vmatpush1.msra.mxu0 0.0
    %1874 = vmatprep.subr.mxu0 0.0
    %1875 = vmatpush1.msra.mxu0 0.0
    %1876 = vmatprep.subr.mxu0 0.0
    %1877 = vmatpush1.msra.mxu0 0.0
    %1878 = vmatprep.subr.mxu0 0.0
    %1879 = vmatpush1.msra.mxu0 0.0
    %1880 = vmatprep.subr.mxu0 0.0
    %1881 = vmatpush1.msra.mxu0 0.0
    %1882 = vmatprep.subr.mxu0 0.0
    %1883 = vmatpush1.msra.mxu0 0.0
    %1884 = vmatprep.subr.mxu0 0.0
    %1885 = vmatpush1.msra.mxu0 0.0
    %1886 = vmatprep.subr.mxu0 0.0
    %1887 = vmatpush1.msra.mxu0 0.0
    %1888 = vmatprep.subr.mxu0 0.0
    %1889 = vmatpush1.msra.mxu0 0.0
    %1890 = vmatprep.subr.mxu0 0.0
    %1891 = vmatpush1.msra.mxu0 0.0
    %1892 = vmatprep.subr.mxu0 0.0
    %1893 = vmatpush1.msra.mxu0 0.0
    %1894 = vmatprep.subr.mxu0 0.0
    %1895 = vmatpush1.msra.mxu0 0.0
    %1896 = vmatprep.subr.mxu0 0.0
    %1897 = vmatpush1.msra.mxu0 0.0
    %1898 = vmatprep.subr.mxu0 0.0
    %1899 = vmatpush1.msra.mxu0 0.0
    %1900 = vmatprep.subr.mxu0 0.0
    %1901 = vmatpush1.msra.mxu0 0.0
    %1902 = vmatprep.mubr.f32.mxu0 0.0
    %1903 = vmatmul.mubr.f32.gmra.mrb[0].mxu0 %v122
    %v1904 = vpop.f32.mrb[0].mxu0
    %v1905 = vadd.f32 %v1830, %v1904
    %v1906 = vpop.f32.mrb[0].mxu0
    %1907 = vmatprep.mubr.f32.mxu0 0.0
    %1908 = vmatmul.mubr.f32.gmra.mrb[0].mxu0 %v125
    %v1909 = vpop.f32.mrb[0].mxu0
    %v1910 = vadd.f32 %v1835, %v1909
    %v1911 = vpop.f32.mrb[0].mxu0
    %1912 = vdwg.mxu0
    %1914 = vset.pattern.permute.xlu0 0
    %1915 = vperm.xlu0 %1914, %v1654
    %v1916 = vpop.permute.xlu0 %1915
    %1919 = vset.pattern.permute.xlu0 0
    %1920 = vperm.xlu0 %1919, %v1656
    %v1921 = vpop.permute.xlu0 %1920
    %v1923 = vmul.f32 %v1709, %v1916
    %v1924 = vmul.f32 %v1710, %v1921
    %1925 = vmatprep.subr.mxu0 0.0
    %1926 = vmatpush1.msra.mxu0 %v1731
    %1927 = vmatprep.subr.mxu0 0.0
    %1928 = vmatpush1.msra.mxu0 %v1732
    %1929 = vmatprep.subr.mxu0 0.0
    %1930 = vmatpush1.msra.mxu0 %v1733
    %1931 = vmatprep.subr.mxu0 0.0
    %1932 = vmatpush1.msra.mxu0 %v1734
    %1933 = vmatprep.subr.mxu0 0.0
    %1934 = vmatpush1.msra.mxu0 %v1735
    %1935 = vmatprep.subr.mxu0 0.0
    %1936 = vmatpush1.msra.mxu0 %v1736
    %1937 = vmatprep.subr.mxu0 0.0
    %1938 = vmatpush1.msra.mxu0 %v1737
    %1939 = vmatprep.subr.mxu0 0.0
    %1940 = vmatpush1.msra.mxu0 %v1738
    %1941 = vmatprep.subr.mxu0 0.0
    %1942 = vmatpush1.msra.mxu0 %v1739
    %1943 = vmatprep.subr.mxu0 0.0
    %1944 = vmatpush1.msra.mxu0 %v1740
    %1945 = vmatprep.subr.mxu0 0.0
    %1946 = vmatpush1.msra.mxu0 %v1741
    %1947 = vmatprep.subr.mxu0 0.0
    %1948 = vmatpush1.msra.mxu0 %v1742
    %1949 = vmatprep.subr.mxu0 0.0
    %1950 = vmatpush1.msra.mxu0 %v1743
    %1951 = vmatprep.subr.mxu0 0.0
    %1952 = vmatpush1.msra.mxu0 %v1744
    %1953 = vmatprep.subr.mxu0 0.0
    %1954 = vmatpush1.msra.mxu0 %v1745
    %1955 = vmatprep.subr.mxu0 0.0
    %1956 = vmatpush1.msra.mxu0 %v1746
    %1957 = vmatprep.subr.mxu0 0.0
    %1958 = vmatpush1.msra.mxu0 0.0
    %1959 = vmatprep.subr.mxu0 0.0
    %1960 = vmatpush1.msra.mxu0 0.0
    %1961 = vmatprep.subr.mxu0 0.0
    %1962 = vmatpush1.msra.mxu0 0.0
    %1963 = vmatprep.subr.mxu0 0.0
    %1964 = vmatpush1.msra.mxu0 0.0
    %1965 = vmatprep.subr.mxu0 0.0
    %1966 = vmatpush1.msra.mxu0 0.0
    %1967 = vmatprep.subr.mxu0 0.0
    %1968 = vmatpush1.msra.mxu0 0.0
    %1969 = vmatprep.subr.mxu0 0.0
    %1970 = vmatpush1.msra.mxu0 0.0
    %1971 = vmatprep.subr.mxu0 0.0
    %1972 = vmatpush1.msra.mxu0 0.0
    %1973 = vmatprep.subr.mxu0 0.0
    %1974 = vmatpush1.msra.mxu0 0.0
    %1975 = vmatprep.subr.mxu0 0.0
    %1976 = vmatpush1.msra.mxu0 0.0
    %1977 = vmatprep.subr.mxu0 0.0
    %1978 = vmatpush1.msra.mxu0 0.0
    %1979 = vmatprep.subr.mxu0 0.0
    %1980 = vmatpush1.msra.mxu0 0.0
    %1981 = vmatprep.subr.mxu0 0.0
    %1982 = vmatpush1.msra.mxu0 0.0
    %1983 = vmatprep.subr.mxu0 0.0
    %1984 = vmatpush1.msra.mxu0 0.0
    %1985 = vmatprep.subr.mxu0 0.0
    %1986 = vmatpush1.msra.mxu0 0.0
    %1987 = vmatprep.subr.mxu0 0.0
    %1988 = vmatpush1.msra.mxu0 0.0
    %1989 = vmatprep.mubr.f32.mxu0 0.0
    %1990 = vmatmul.mubr.f32.gmra.mrb[0].mxu0 %v1923
    %v1991 = vpop.f32.mrb[0].mxu0
    %v1992 = vadd.f32 0.0, %v1991
    %v1993 = vpop.f32.mrb[0].mxu0
    %1994 = vmatprep.mubr.f32.mxu0 0.0
    %1995 = vmatmul.mubr.f32.gmra.mrb[0].mxu0 %v1924
    %v1996 = vpop.f32.mrb[0].mxu0
    %v1997 = vadd.f32 0.0, %v1996
    %v1998 = vpop.f32.mrb[0].mxu0
    %1999 = vdwg.mxu0
    %v2000 = vadd.f32 %v1905, %v1992
    %v2001 = vadd.f32 %v1910, %v1997
    %2003 = vset.pattern.permute.xlu0 0
    %2004 = vperm.xlu0 %2003, %v1662
    %v2005 = vpop.permute.xlu0 %2004
    %2008 = vset.pattern.permute.xlu0 0
    %2009 = vperm.xlu0 %2008, %v1664
    %v2010 = vpop.permute.xlu0 %2009
    %v2012 = vmul.f32 %v1709, %v2005
    %v2013 = vmul.f32 %v1710, %v2010
    %2014 = vmatprep.subr.mxu0 0.0
    %2015 = vmatpush1.msra.mxu0 %v1747
    %2016 = vmatprep.subr.mxu0 0.0
    %2017 = vmatpush1.msra.mxu0 %v1748
    %2018 = vmatprep.subr.mxu0 0.0
    %2019 = vmatpush1.msra.mxu0 %v1749
    %2020 = vmatprep.subr.mxu0 0.0
    %2021 = vmatpush1.msra.mxu0 %v1750
    %2022 = vmatprep.subr.mxu0 0.0
    %2023 = vmatpush1.msra.mxu0 %v1751
    %2024 = vmatprep.subr.mxu0 0.0
    %2025 = vmatpush1.msra.mxu0 %v1752
    %2026 = vmatprep.subr.mxu0 0.0
    %2027 = vmatpush1.msra.mxu0 %v1753
    %2028 = vmatprep.subr.mxu0 0.0
    %2029 = vmatpush1.msra.mxu0 %v1754
    %2030 = vmatprep.subr.mxu0 0.0
    %2031 = vmatpush1.msra.mxu0 %v1755
    %2032 = vmatprep.subr.mxu0 0.0
    %2033 = vmatpush1.msra.mxu0 %v1756
    %2034 = vmatprep.subr.mxu0 0.0
    %2035 = vmatpush1.msra.mxu0 %v1757
    %2036 = vmatprep.subr.mxu0 0.0
    %2037 = vmatpush1.msra.mxu0 %v1758
    %2038 = vmatprep.subr.mxu0 0.0
    %2039 = vmatpush1.msra.mxu0 %v1759
    %2040 = vmatprep.subr.mxu0 0.0
    %2041 = vmatpush1.msra.mxu0 %v1760
    %2042 = vmatprep.subr.mxu0 0.0
    %2043 = vmatpush1.msra.mxu0 %v1761
    %2044 = vmatprep.subr.mxu0 0.0
    %2045 = vmatpush1.msra.mxu0 %v1762
    %2046 = vmatprep.subr.mxu0 0.0
    %2047 = vmatpush1.msra.mxu0 0.0
    %2048 = vmatprep.subr.mxu0 0.0
    %2049 = vmatpush1.msra.mxu0 0.0
    %2050 = vmatprep.subr.mxu0 0.0
    %2051 = vmatpush1.msra.mxu0 0.0
    %2052 = vmatprep.subr.mxu0 0.0
    %2053 = vmatpush1.msra.mxu0 0.0
    %2054 = vmatprep.subr.mxu0 0.0
    %2055 = vmatpush1.msra.mxu0 0.0
    %2056 = vmatprep.subr.mxu0 0.0
    %2057 = vmatpush1.msra.mxu0 0.0
    %2058 = vmatprep.subr.mxu0 0.0
    %2059 = vmatpush1.msra.mxu0 0.0
    %2060 = vmatprep.subr.mxu0 0.0
    %2061 = vmatpush1.msra.mxu0 0.0
    %2062 = vmatprep.subr.mxu0 0.0
    %2063 = vmatpush1.msra.mxu0 0.0
    %2064 = vmatprep.subr.mxu0 0.0
    %2065 = vmatpush1.msra.mxu0 0.0
    %2066 = vmatprep.subr.mxu0 0.0
    %2067 = vmatpush1.msra.mxu0 0.0
    %2068 = vmatprep.subr.mxu0 0.0
    %2069 = vmatpush1.msra.mxu0 0.0
    %2070 = vmatprep.subr.mxu0 0.0
    %2071 = vmatpush1.msra.mxu0 0.0
    %2072 = vmatprep.subr.mxu0 0.0
    %2073 = vmatpush1.msra.mxu0 0.0
    %2074 = vmatprep.subr.mxu0 0.0
    %2075 = vmatpush1.msra.mxu0 0.0
    %2076 = vmatprep.subr.mxu0 0.0
    %2077 = vmatpush1.msra.mxu0 0.0
    %2078 = vmatprep.mubr.f32.mxu0 0.0
    %2079 = vmatmul.mubr.f32.gmra.mrb[0].mxu0 %v2012
    %v2080 = vpop.f32.mrb[0].mxu0
    %v2081 = vadd.f32 0.0, %v2080
    %v2082 = vpop.f32.mrb[0].mxu0
    %2083 = vmatprep.mubr.f32.mxu0 0.0
    %2084 = vmatmul.mubr.f32.gmra.mrb[0].mxu0 %v2013
    %v2085 = vpop.f32.mrb[0].mxu0
    %v2086 = vadd.f32 0.0, %v2085
    %v2087 = vpop.f32.mrb[0].mxu0
    %2088 = vdwg.mxu0
    %v2089 = vadd.f32 %v2000, %v2081
    %v2090 = vadd.f32 %v2001, %v2086
    %v2091 = vld [vmem:[%s7] sm:$0x1]
    %v2093 = vlaneseq
    %v2094 = vshrl.u32 %v2093, 7
    %v2095 = vsub.s32 0, %v2094
    %v2096 = vrot.slane %v2091, %v2095
    %v2098 = vadd.f32 %v2089, %v2096
    %v2099 = vadd.f32 %v2090, %v2096
    %v2100 = vmul.f32 %v2098, 0.25
    %v2101 = vmul.f32 %v2099, 0.25
    %v2102 = vsel %vm120, %v2100, 0.0
    %v2103 = vsel %vm120, %v2101, 0.0
    %v2104 = vadd.f32 %v2102, %v2103
    %v2105 = vrot.slane %v2104, 4
    %v2106 = vadd.f32 %v2104, %v2105
    %v2107 = vrot.slane %v2106, 2
    %v2108 = vadd.f32 %v2106, %v2107
    %v2109 = vrot.slane %v2108, 1
    %v2110 = vadd.f32 %v2108, %v2109
    %v2111 = vrcp.pop 16.0
    %v2112 = vmul.f32 %v2110, %v2111
    %v2113 = vsub.f32 %v2100, %v2112
    %v2114 = vsub.f32 %v2101, %v2112
    %v2115 = vmul.f32 %v2113, %v2113
    %v2116 = vmul.f32 %v2114, %v2114
    %v2117 = vsel %vm120, %v2115, 0.0
    %v2118 = vsel %vm120, %v2116, 0.0
    %v2119 = vadd.f32 %v2117, %v2118
    %v2120 = vrot.slane %v2119, 4
    %v2121 = vadd.f32 %v2119, %v2120
    %v2122 = vrot.slane %v2121, 2
    %v2123 = vadd.f32 %v2121, %v2122
    %v2124 = vrot.slane %v2123, 1
    %v2125 = vadd.f32 %v2123, %v2124
    %v2126 = vmul.f32 %v2125, %v2111
    %v2127 = vadd.f32 %v2126, 1e-05
    %v2128 = vrsqrt.pop %v2127
    %v2129 = vmul.f32 %v2113, %v2128
    %v2130 = vmul.f32 %v2114, %v2128
    %v2131 = vld [vmem:[%s8] sm:$0x1]
    %v2133 = vlaneseq
    %v2134 = vshrl.u32 %v2133, 7
    %v2135 = vsub.s32 0, %v2134
    %v2136 = vrot.slane %v2131, %v2135
    %v2138 = vmul.f32 %v2129, %v2136
    %v2139 = vmul.f32 %v2130, %v2136
    %v2140 = vld [vmem:[%s9] sm:$0x1]
    %v2142 = vlaneseq
    %v2143 = vshrl.u32 %v2142, 7
    %v2144 = vsub.s32 0, %v2143
    %v2145 = vrot.slane %v2140, %v2144
    %v2147 = vadd.f32 %v2138, %v2145
    %v2148 = vadd.f32 %v2139, %v2145
    %v2149 = vld [vmem:[%s10] sm:$0xff]
    %v2150 = vld [vmem:[%s10 + $0x8] sm:$0xff]
    %v2151 = vld [vmem:[%s10 + $0x10] sm:$0xff]
    %v2152 = vld [vmem:[%s10 + $0x18] sm:$0xff]
    %v2153 = vld [vmem:[%s11] sm:$0x1]
    %v2155 = vlaneseq
    %v2156 = vshrl.u32 %v2155, 7
    %v2157 = vsub.s32 0, %v2156
    %v2158 = vrot.slane %v2153, %v2157
    %v2161 = vsel %vm120, %v2147, 0
    %v2164 = vsel %vm120, %v2148, 0
    %2166 = vmatprep.subr.mxu0 0.0
    %2167 = vmatpush1.msra.mxu0 %v2149
    %2168 = vmatprep.subr.mxu0 0.0
    %2169 = vmatpush1.msra.mxu0 %v2150
    %2170 = vmatprep.subr.mxu0 0.0
    %2171 = vmatpush1.msra.mxu0 %v2151
    %2172 = vmatprep.subr.mxu0 0.0
    %2173 = vmatpush1.msra.mxu0 %v2152
    %2174 = vmatprep.subr.mxu0 0.0
    %2175 = vmatpush1.msra.mxu0 0.0
    %2176 = vmatprep.subr.mxu0 0.0
    %2177 = vmatpush1.msra.mxu0 0.0
    %2178 = vmatprep.subr.mxu0 0.0
    %2179 = vmatpush1.msra.mxu0 0.0
    %2180 = vmatprep.subr.mxu0 0.0
    %2181 = vmatpush1.msra.mxu0 0.0
    %2182 = vmatprep.subr.mxu0 0.0
    %2183 = vmatpush1.msra.mxu0 0.0
    %2184 = vmatprep.subr.mxu0 0.0
    %2185 = vmatpush1.msra.mxu0 0.0
    %2186 = vmatprep.subr.mxu0 0.0
    %2187 = vmatpush1.msra.mxu0 0.0
    %2188 = vmatprep.subr.mxu0 0.0
    %2189 = vmatpush1.msra.mxu0 0.0
    %2190 = vmatprep.subr.mxu0 0.0
    %2191 = vmatpush1.msra.mxu0 0.0
    %2192 = vmatprep.subr.mxu0 0.0
    %2193 = vmatpush1.msra.mxu0 0.0
    %2194 = vmatprep.subr.mxu0 0.0
    %2195 = vmatpush1.msra.mxu0 0.0
    %2196 = vmatprep.subr.mxu0 0.0
    %2197 = vmatpush1.msra.mxu0 0.0
    %2198 = vmatprep.subr.mxu0 0.0
    %2199 = vmatpush1.msra.mxu0 0.0
    %2200 = vmatprep.subr.mxu0 0.0
    %2201 = vmatpush1.msra.mxu0 0.0
    %2202 = vmatprep.subr.mxu0 0.0
    %2203 = vmatpush1.msra.mxu0 0.0
    %2204 = vmatprep.subr.mxu0 0.0
    %2205 = vmatpush1.msra.mxu0 0.0
    %2206 = vmatprep.subr.mxu0 0.0
    %2207 = vmatpush1.msra.mxu0 0.0
    %2208 = vmatprep.subr.mxu0 0.0
    %2209 = vmatpush1.msra.mxu0 0.0
    %2210 = vmatprep.subr.mxu0 0.0
    %2211 = vmatpush1.msra.mxu0 0.0
    %2212 = vmatprep.subr.mxu0 0.0
    %2213 = vmatpush1.msra.mxu0 0.0
    %2214 = vmatprep.subr.mxu0 0.0
    %2215 = vmatpush1.msra.mxu0 0.0
    %2216 = vmatprep.subr.mxu0 0.0
    %2217 = vmatpush1.msra.mxu0 0.0
    %2218 = vmatprep.subr.mxu0 0.0
    %2219 = vmatpush1.msra.mxu0 0.0
    %2220 = vmatprep.subr.mxu0 0.0
    %2221 = vmatpush1.msra.mxu0 0.0
    %2222 = vmatprep.subr.mxu0 0.0
    %2223 = vmatpush1.msra.mxu0 0.0
    %2224 = vmatprep.subr.mxu0 0.0
    %2225 = vmatpush1.msra.mxu0 0.0
    %2226 = vmatprep.subr.mxu0 0.0
    %2227 = vmatpush1.msra.mxu0 0.0
    %2228 = vmatprep.subr.mxu0 0.0
    %2229 = vmatpush1.msra.mxu0 0.0
    %2230 = vmatprep.mubr.f32.mxu0 0.0
    %2231 = vmatmul.mubr.f32.gmra.mrb[0].mxu0 %v2161
    %v2232 = vpop.f32.mrb[0].mxu0
    %v2233 = vadd.f32 %v2158, %v2232
    %v2234 = vpop.f32.mrb[0].mxu0
    %2235 = vmatprep.mubr.f32.mxu0 0.0
    %2236 = vmatmul.mubr.f32.gmra.mrb[0].mxu0 %v2164
    %v2237 = vpop.f32.mrb[0].mxu0
    %v2238 = vadd.f32 %v2158, %v2237
    %v2239 = vpop.f32.mrb[0].mxu0
    %2240 = vdwg.mxu0
    %vm2241 = vcmp.ge.f32.partialorder %v2233, 0.0
    %vm2242 = vcmp.ge.f32.partialorder %v2238, 0.0
    %v2243 = vmul.f32 %v2233, 0.01
    %v2244 = vmul.f32 %v2238, 0.01
    %v2245 = vsel %vm2241, %v2233, %v2243
    %v2246 = vsel %vm2242, %v2238, %v2244
    %v2247 = vadd.f32 %v2245, %v42
    %v2248 = vadd.f32 %v2246, %v43
    %v2249 = vmax.f32 %v2247, 0.0
    %v2250 = vmax.f32 %v2248, 0.0
    %2251 = vst.msk [vmem:[#allocation2] sm:$0xff] %vm120, %v2249
    %2252 = vst.msk [vmem:[#allocation2 + $0x8] sm:$0xff] %vm120, %v2250
    // Predicated region
    $region50: #{pna_conv_module_forward.1} parent=1 // pred_check
      _
    $region51: #{pna_conv_module_forward.1} parent=1 // pred_check_branch
      %2254 = sbr.rel (0) target = $region53
    $region52: #{pna_conv_module_forward.1} parent=1 // pred_region
      %s2256 = ssub.s32 256, 256
      %2257 = vsyncadd [#allocation3], %s2256
      %s2258 = sshll.u32 [#allocation2], 4
      %s2259 = int_to_ptr.vmem [resolvable:$true] %s2258
      %2264 = dma.vmem_to_hbm [thread:$0]  %s2259, 256, %s12, [#allocation3], 128, 128, 8
    $region53: #{pna_conv_module_forward.1} parent=1 // pred_fallthru
      _
    // Predicated region
    $region54: #{pna_conv_module_forward.1} parent=1 // pred_check
      _
    $region55: #{pna_conv_module_forward.1} parent=1 // pred_check_branch
      %2266 = sbr.rel (0) target = $region57
    $region56: #{pna_conv_module_forward.1} parent=1 // pred_region
      %2267 = dma.done [#allocation3], 256
    $region57: #{pna_conv_module_forward.1} parent=1 // pred_fallthru
      _
    %2268 = vsyncpa [#allocation3], 1

</llo_original>
